<compile_context>
chip_gen: v5e
topology: v5e:2x2
jax: 0.10.0
libtpu: 0.0.40
codegen_flags: <defaults>
</compile_context>

<pallas_src>
import functools

import jax
import jax.numpy as jnp
from jax.experimental import pallas as pl
from jax.experimental.pallas import tpu as pltpu


# ----------------------------------------------------------------------------- specs
def _vmem():
    return pl.BlockSpec(memory_space=pltpu.MemorySpace.VMEM)


def _smem():
    return pl.BlockSpec(memory_space=pltpu.MemorySpace.SMEM)


def _round_up(x, m):
    return -(-x // m) * m


# ----------------------------------------------------------------------------- kernel
def _fused_fwd_kernel(x_ref, w_img_ref, b_img_ref,
                      z_ref, w1_ref, b1_ref,
                      r_ref, pm_ref, w2mu_ref, w2lv_ref, pbmu_ref, pblv_ref,
                      place_ref, eps_ref, base_ref,
                      txt_w_ref, txt_b_ref, gamma_ref, beta_ref,
                      eotsel_ref, proj_ref, ls_ref,
                      logits_ref, kl_ref,
                      *, n_sample, dc, dc_pad, n_classes):
    # ---- image encoder stand-in (bf16 x bf16 -> f32) + L2 norm; logit scale and the
    #      1/n_sample averaging are folded into ONE scalar applied here (smaller operand).
    img = jnp.dot(x_ref[...], w_img_ref[...], preferred_element_type=jnp.float32)
    img = img + b_img_ref[...]
    total_scale = jnp.exp(ls_ref[0, 0]) * (1.0 / n_sample)
    img = img * (jax.lax.rsqrt(jnp.sum(img * img, axis=-1, keepdims=True) + 1e-12)
                 * total_scale)

    # ---- fused VAE prompt generator in placed-weight form (no in-kernel reshape).
    h = jnp.dot(z_ref[...], w1_ref[...], preferred_element_type=jnp.float32) + b1_ref[...]
    h = jnp.maximum(h, 0.0)                                          # [1, hidden]
    hrow = jnp.dot(h, r_ref[...], preferred_element_type=jnp.float32)  # [1, n_ctx*hidden]
    ph = pm_ref[...] * hrow                                          # [Cn*S, n_ctx*hidden]
    pmu = jnp.dot(ph, w2mu_ref[...], preferred_element_type=jnp.float32) + pbmu_ref[...]
    plv = jnp.dot(ph, w2lv_ref[...], preferred_element_type=jnp.float32) + pblv_ref[...]
    pstd = jnp.exp(0.5 * plv)                                        # [Cn*S, Dc]
    # Each ctx row appears n_classes times among the placed rows; non-ctx rows contribute
    # exactly 0 (mu=0, lv=0 -> 1 + 0 - 0 - 1).  So KL = -0.5/Cn * sum over placed rows.
    kl_ref[0, 0] = (-0.5 / n_classes) * jnp.sum(1.0 + plv - pmu * pmu - pstd * pstd)

    # ---- place eps for ALL samples with ONE matmul, hoisted out of the sample loop.
    peps = jnp.dot(place_ref[...], eps_ref[...], preferred_element_type=jnp.float32)

    base = base_ref[...]        # [Cn*S, Dc]  (prefix | 0 | suffix) + pos, pre-flattened
    txt_w = txt_w_ref[...]      # [Dc, Dc] bf16
    txt_b = txt_b_ref[...]
    gamma = gamma_ref[...]
    beta = beta_ref[...]
    eotsel = eotsel_ref[...]    # [Cn_pad, Cn*S] f32 one-hot EOT row selector (pad rows = 0)
    proj = proj_ref[...]        # [Dc, D] bf16

    cn_pad = eotsel.shape[0]
    d_emb = proj.shape[1]

    pctx = pmu                                  # placed ctx state, accumulates across samples
    acc = jnp.zeros((cn_pad, d_emb), jnp.float32)
    # n_sample is small & static -> unrolled loop, VMEM/vreg-resident state.
    for s in range(n_sample):
        # reference semantics: ctx_matrix ACCUMULATES eps*std across samples (pure VPU).
        pctx = pctx + peps[:, s * dc_pad:s * dc_pad + dc] * pstd
        x2d = base + pctx                                            # [Cn*S, Dc]
        # token-wise GELU MLP block (stand-in transformer) with residual, bf16 MXU / f32 acc.
        ht = jnp.dot(x2d.astype(jnp.bfloat16), txt_w,
                     preferred_element_type=jnp.float32) + txt_b
        x2d = x2d + jax.nn.gelu(ht)
        # ln_final
        m = jnp.mean(x2d, axis=-1, keepdims=True)
        v = jnp.mean((x2d - m) * (x2d - m), axis=-1, keepdims=True)
        xn = (x2d - m) * jax.lax.rsqrt(v + 1e-5) * gamma + beta
        # EOT token gather as an f32 one-hot selection matmul -> [Cn_pad, Dc]
        eot = jnp.dot(eotsel, xn, preferred_element_type=jnp.float32)
        # text projection + L2 norm -> [Cn_pad, D]; padded classes stay exactly zero.
        tf = jnp.dot(eot.astype(jnp.bfloat16), proj, preferred_element_type=jnp.float32)
        tf = tf * jax.lax.rsqrt(jnp.sum(tf * tf, axis=-1, keepdims=True) + 1e-12)
        acc = acc + tf

    # logits = exp(logit_scale)/n_sample * img_n @ acc.T  (scale already folded into img).
    # RHS-transposed contraction is fine while Cn_pad stays at 128; for large class counts
    # accumulate the text features transposed instead.
    logits_ref[...] = jax.lax.dot_general(
        img, acc, dimension_numbers=(((1,), (1,)), ((), ())),
        preferred_element_type=jnp.float32)                          # [B, Cn_pad] lane-dense


# ----------------------------------------------------------------------------- prep
def precompute_static(params):
    """Param-only prep, run ONCE outside the per-call jitted forward."""
    Cn, _, Dc = params["prefix_emb"].shape
    S = params["pos_emb"].shape[0]
    n_suffix = params["suffix_emb"].shape[1]
    n_ctx = S - 1 - n_suffix
    n_out = n_ctx * Dc
    hidden = params["pg_w1"].shape[1]

    # flattened (prefix | 0 | suffix) + positional embedding -> [Cn*S, Dc]
    zeros_ctx = jnp.zeros((Cn, n_ctx, Dc), jnp.float32)
    base = jnp.concatenate([params["prefix_emb"], zeros_ctx, params["suffix_emb"]], axis=1)
    base = base.reshape(Cn * S, Dc) + jnp.tile(params["pos_emb"], (Cn, 1))

    # 0/1 placement matrix scattering the shared ctx rows into the flattened prompts.
    row_pos = jnp.arange(Cn * S) % S
    is_ctx = (row_pos >= 1) & (row_pos <= n_ctx)
    place = (is_ctx[:, None]
             & (jnp.arange(n_ctx)[None, :] == (row_pos[:, None] - 1))).astype(jnp.float32)

    # Placed-weight form of the generator's mu|log_var projection:
    #   R[k, c*hidden+k]   = 1   (repeat h along ctx blocks)
    #   M[c, c*hidden+k]   = 1   (ctx-block membership);   PM = place @ M
    #   W2mu[c*hidden+k,d] = wmu[k, c*Dc+d]   (same for log_var)
    M = jnp.repeat(jnp.eye(n_ctx, dtype=jnp.float32), hidden, axis=1)  # [n_ctx, n_ctx*hidden]
    R = jnp.tile(jnp.eye(hidden, dtype=jnp.float32), (1, n_ctx))       # [hidden, n_ctx*hidden]
    PM = place @ M                                                     # [Cn*S, n_ctx*hidden]

    wmu = params["pg_wmulv"][:, :n_out]
    wlv = params["pg_wmulv"][:, n_out:]
    W2mu = wmu.reshape(hidden, n_ctx, Dc).transpose(1, 0, 2).reshape(n_ctx * hidden, Dc)
    W2lv = wlv.reshape(hidden, n_ctx, Dc).transpose(1, 0, 2).reshape(n_ctx * hidden, Dc)
    bmu = params["pg_bmulv"][:, :n_out].reshape(n_ctx, Dc)
    blv = params["pg_bmulv"][:, n_out:].reshape(n_ctx, Dc)
    PBmu = place @ bmu
    PBlv = place @ blv

    # EOT one-hot selector over the flattened token axis, class-padded to a multiple of 128
    # so the logits store is lane-dense; padded rows select nothing -> zero features/logits.
    cn_pad = max(128, _round_up(Cn, 128))
    eot_idx = jnp.argmax(params["tokenized_prompts"], axis=-1)          # EOT has max token id
    flat_idx = jnp.arange(Cn, dtype=jnp.int32) * S + eot_idx.astype(jnp.int32)
    if cn_pad > Cn:
        flat_idx = jnp.concatenate(
            [flat_idx, -jnp.ones((cn_pad - Cn,), jnp.int32)])           # one_hot(-1) == zeros
    eotsel = jax.nn.one_hot(flat_idx, Cn * S, dtype=jnp.float32)        # [cn_pad, Cn*S]

    return dict(base=base, place=place, R=R, PM=PM, W2mu=W2mu, W2lv=W2lv,
                PBmu=PBmu, PBlv=PBlv, eotsel=eotsel)


# ----------------------------------------------------------------------------- model
def clip_lrn_promptg_forward(image, params, static, *, n_sample=2, key=None):
    """Reproduces CLIP_Lrn_PromptG.forward(image, combine_mode='avg', n_smaple=n_sample)."""
    if key is None:
        key = jax.random.PRNGKey(42)

    B, C, H, W = image.shape
    Cn, _, Dc = params["prefix_emb"].shape
    n_ctx = static["place"].shape[1]
    cn_pad = static["eotsel"].shape[0]
    dc_pad = _round_up(Dc, 128)

    # fresh per-sample eps (reference: torch.randn_like inside the loop); drawn directly
    # lane-blocked so every per-sample slice in the kernel is vreg-aligned.
    eps = jax.random.normal(key, (n_ctx, n_sample * dc_pad), dtype=jnp.float32)

    x_flat = image.reshape(B, C * H * W).astype(jnp.bfloat16)

    logits_pad, kl = pl.pallas_call(
        functools.partial(_fused_fwd_kernel, n_sample=n_sample, dc=Dc,
                          dc_pad=dc_pad, n_classes=Cn),
        out_shape=(jax.ShapeDtypeStruct((B, cn_pad), jnp.float32),
                   jax.ShapeDtypeStruct((1, 1), jnp.float32)),
        in_specs=[_vmem()] * 21 + [_smem()],
        out_specs=(_vmem(), _smem()),
    )(x_flat, params["w_img"], params["b_img"],
      params["z"], params["pg_w1"], params["pg_b1"],
      static["R"], static["PM"], static["W2mu"], static["W2lv"],
      static["PBmu"], static["PBlv"], static["place"], eps, static["base"],
      params["txt_w"], params["txt_b"], params["ln_gamma"], params["ln_beta"],
      static["eotsel"], params["text_proj"], params["logit_scale"])

    return logits_pad[:, :Cn], kl[0, 0]


# ----------------------------------------------------------------------------- params
def init_params(key, *, C, H, W, n_classes, n_ctx, ctx_dim, embed_dim,
                latent_dim, hidden_dim, n_suffix):
    ks = jax.random.split(key, 16)
    P = C * H * W
    seq_len = 1 + n_ctx + n_suffix
    n_out = n_ctx * ctx_dim

    # tokenized prompts: SOS ... class tokens ... EOT (EOT has max id -> argmax = last)
    toks = jnp.tile(jnp.arange(seq_len, dtype=jnp.int32)[None], (n_classes, 1))
    toks = toks.at[:, 0].set(100).at[:, -1].set(49407)

    wmu = 0.1 * jax.random.normal(ks[3], (hidden_dim, n_out), jnp.float32)
    wlv = 0.1 * jax.random.normal(ks[4], (hidden_dim, n_out), jnp.float32)
    bmu = jnp.zeros((1, n_out), jnp.float32)
    blv = jnp.full((1, n_out), -2.0, jnp.float32)

    return dict(
        # image encoder stand-in (bf16 weights: MXU operand + half the DMA)
        w_img=(0.02 * jax.random.normal(ks[0], (P, embed_dim), jnp.float32)
               ).astype(jnp.bfloat16),
        b_img=jnp.zeros((1, embed_dim), jnp.float32),
        # prompt generator (VAE-style); mu|log_var projections kept in the original layout
        # here and rearranged once by precompute_static().
        z=jax.random.normal(ks[1], (1, latent_dim), jnp.float32),
        pg_w1=0.1 * jax.random.normal(ks[2], (latent_dim, hidden_dim), jnp.float32),
        pg_b1=jnp.zeros((1, hidden_dim), jnp.float32),
        pg_wmulv=jnp.concatenate([wmu, wlv], axis=1),
        pg_bmulv=jnp.concatenate([bmu, blv], axis=1),
        # text encoder stand-in
        prefix_emb=0.02 * jax.random.normal(ks[5], (n_classes, 1, ctx_dim), jnp.float32),
        suffix_emb=0.02 * jax.random.normal(ks[6], (n_classes, n_suffix, ctx_dim), jnp.float32),
        pos_emb=0.01 * jax.random.normal(ks[7], (seq_len, ctx_dim), jnp.float32),
        txt_w=(0.05 * jax.random.normal(ks[8], (ctx_dim, ctx_dim), jnp.float32)
               ).astype(jnp.bfloat16),
        txt_b=jnp.zeros((1, ctx_dim), jnp.float32),
        ln_gamma=jnp.ones((1, ctx_dim), jnp.float32),
        ln_beta=jnp.zeros((1, ctx_dim), jnp.float32),
        text_proj=(0.05 * jax.random.normal(ks[9], (ctx_dim, embed_dim), jnp.float32)
                   ).astype(jnp.bfloat16),
        tokenized_prompts=toks,
        logit_scale=jnp.full((1, 1), jnp.log(1.0 / 0.07), jnp.float32),
    )


# ----------------------------------------------------------------------------- main
if __name__ == "__main__":
    B, C, H, W = 2, 3, 16, 16
    n_classes, n_ctx, ctx_dim = 8, 4, 32
    embed_dim, latent_dim, hidden_dim, n_suffix = 64, 16, 32, 3

    root = jax.random.PRNGKey(0)
    k_param, k_img, k_samp = jax.random.split(root, 3)

    params = init_params(k_param, C=C, H=H, W=W, n_classes=n_classes,
                         n_ctx=n_ctx, ctx_dim=ctx_dim, embed_dim=embed_dim,
                         latent_dim=latent_dim, hidden_dim=hidden_dim,
                         n_suffix=n_suffix)
    # param-only prep runs ONCE, outside the jitted per-call forward
    static = precompute_static(params)

    image = jax.random.normal(k_img, (B, C, H, W), jnp.float32)  # NCHW like PyTorch

    fwd = jax.jit(functools.partial(clip_lrn_promptg_forward, n_sample=2))
    logits, kl_loss = fwd(image, params, static, key=k_samp)
    jax.block_until_ready((logits, kl_loss))

    assert logits.shape == (B, n_classes)
    assert kl_loss.shape == ()
    assert bool(jnp.all(jnp.isfinite(logits))) and bool(jnp.isfinite(kl_loss))
    print("KERNEL_OK")
</pallas_src>

<mosaic_0001>
module attributes {stable_mosaic.version = 11 : i64} {
  func.func @_fused_fwd_kernel(%arg0: memref<2x768xbf16, #tpu.memory_space<vmem>>, %arg1: memref<768x64xbf16, #tpu.memory_space<vmem>>, %arg2: memref<1x64xf32, #tpu.memory_space<vmem>>, %arg3: memref<1x16xf32, #tpu.memory_space<vmem>>, %arg4: memref<16x32xf32, #tpu.memory_space<vmem>>, %arg5: memref<1x32xf32, #tpu.memory_space<vmem>>, %arg6: memref<32x128xf32, #tpu.memory_space<vmem>>, %arg7: memref<64x128xf32, #tpu.memory_space<vmem>>, %arg8: memref<128x32xf32, #tpu.memory_space<vmem>>, %arg9: memref<128x32xf32, #tpu.memory_space<vmem>>, %arg10: memref<64x32xf32, #tpu.memory_space<vmem>>, %arg11: memref<64x32xf32, #tpu.memory_space<vmem>>, %arg12: memref<64x4xf32, #tpu.memory_space<vmem>>, %arg13: memref<4x256xf32, #tpu.memory_space<vmem>>, %arg14: memref<64x32xf32, #tpu.memory_space<vmem>>, %arg15: memref<32x32xbf16, #tpu.memory_space<vmem>>, %arg16: memref<1x32xf32, #tpu.memory_space<vmem>>, %arg17: memref<1x32xf32, #tpu.memory_space<vmem>>, %arg18: memref<1x32xf32, #tpu.memory_space<vmem>>, %arg19: memref<128x64xf32, #tpu.memory_space<vmem>>, %arg20: memref<32x64xbf16, #tpu.memory_space<vmem>>, %arg21: memref<1x1xf32, #tpu.memory_space<smem>>, %arg22: memref<2x128xf32, #tpu.memory_space<vmem>>, %arg23: memref<1x1xf32, #tpu.memory_space<smem>>) attributes {dimension_semantics = [], scalar_prefetch = 0 : i64, scratch_operands = 0 : i64, tpu.core_type = #tpu.core_type<tc>} {
    %c0 = arith.constant 0 : index
    %c0_0 = arith.constant 0 : index
    %0 = vector.load %arg0[%c0, %c0_0] : memref<2x768xbf16, #tpu.memory_space<vmem>>, vector<2x768xbf16>
    %c0_1 = arith.constant 0 : index
    %c0_2 = arith.constant 0 : index
    %1 = vector.load %arg1[%c0_1, %c0_2] : memref<768x64xbf16, #tpu.memory_space<vmem>>, vector<768x64xbf16>
    %cst = arith.constant dense<0.000000e+00> : vector<2x64xf32>
    %2 = tpu.matmul %0, %1, %cst {dimension_numbers = #tpu.dot_dimension_numbers<[1], [0], [0], [1], [0, 0, 1, 1], [], []>} : vector<2x768xbf16>, vector<768x64xbf16>, vector<2x64xf32> -> vector<2x64xf32>
    %c0_3 = arith.constant 0 : index
    %c0_4 = arith.constant 0 : index
    %3 = vector.load %arg2[%c0_3, %c0_4] : memref<1x64xf32, #tpu.memory_space<vmem>>, vector<1x64xf32>
    %4 = vector.broadcast %3 : vector<1x64xf32> to vector<2x64xf32>
    %5 = arith.addf %2, %4 : vector<2x64xf32>
    %c0_5 = arith.constant 0 : index
    %c0_6 = arith.constant 0 : index
    %6 = memref.load %arg21[%c0_5, %c0_6] : memref<1x1xf32, #tpu.memory_space<smem>>
    %7 = math.exp %6 : f32
    %cst_7 = arith.constant 5.000000e-01 : f32
    %8 = arith.mulf %7, %cst_7 : f32
    %9 = arith.mulf %5, %5 : vector<2x64xf32>
    %cst_8 = arith.constant dense<0.000000e+00> : vector<2xf32>
    %10 = vector.multi_reduction <add>, %9, %cst_8 [1] : vector<2x64xf32> to vector<2xf32>
    %11 = vector.shape_cast %10 : vector<2xf32> to vector<2x1xf32>
    %cst_9 = arith.constant 9.99999996E-13 : f32
    %12 = vector.broadcast %cst_9 : f32 to vector<2x1xf32>
    %13 = arith.addf %11, %12 : vector<2x1xf32>
    %14 = math.rsqrt %13 : vector<2x1xf32>
    %15 = vector.broadcast %8 : f32 to vector<2x1xf32>
    %16 = arith.mulf %14, %15 : vector<2x1xf32>
    %17 = vector.broadcast %16 : vector<2x1xf32> to vector<2x64xf32>
    %18 = arith.mulf %5, %17 : vector<2x64xf32>
    %c0_10 = arith.constant 0 : index
    %c0_11 = arith.constant 0 : index
    %19 = vector.load %arg3[%c0_10, %c0_11] : memref<1x16xf32, #tpu.memory_space<vmem>>, vector<1x16xf32>
    %c0_12 = arith.constant 0 : index
    %c0_13 = arith.constant 0 : index
    %20 = vector.load %arg4[%c0_12, %c0_13] : memref<16x32xf32, #tpu.memory_space<vmem>>, vector<16x32xf32>
    %cst_14 = arith.constant dense<0.000000e+00> : vector<1x32xf32>
    %21 = tpu.matmul %19, %20, %cst_14 {dimension_numbers = #tpu.dot_dimension_numbers<[1], [0], [0], [1], [0, 0, 1, 1], [], []>} : vector<1x16xf32>, vector<16x32xf32>, vector<1x32xf32> -> vector<1x32xf32>
    %c0_15 = arith.constant 0 : index
    %c0_16 = arith.constant 0 : index
    %22 = vector.load %arg5[%c0_15, %c0_16] : memref<1x32xf32, #tpu.memory_space<vmem>>, vector<1x32xf32>
    %23 = arith.addf %21, %22 : vector<1x32xf32>
    %cst_17 = arith.constant 0.000000e+00 : f32
    %24 = vector.broadcast %cst_17 : f32 to vector<1x32xf32>
    %25 = arith.maximumf %23, %24 : vector<1x32xf32>
    %c0_18 = arith.constant 0 : index
    %c0_19 = arith.constant 0 : index
    %26 = vector.load %arg6[%c0_18, %c0_19] : memref<32x128xf32, #tpu.memory_space<vmem>>, vector<32x128xf32>
    %cst_20 = arith.constant dense<0.000000e+00> : vector<1x128xf32>
    %27 = tpu.matmul %25, %26, %cst_20 {dimension_numbers = #tpu.dot_dimension_numbers<[1], [0], [0], [1], [0, 0, 1, 1], [], []>} : vector<1x32xf32>, vector<32x128xf32>, vector<1x128xf32> -> vector<1x128xf32>
    %c0_21 = arith.constant 0 : index
    %c0_22 = arith.constant 0 : index
    %28 = vector.load %arg7[%c0_21, %c0_22] : memref<64x128xf32, #tpu.memory_space<vmem>>, vector<64x128xf32>
    %29 = vector.broadcast %27 : vector<1x128xf32> to vector<64x128xf32>
    %30 = arith.mulf %28, %29 : vector<64x128xf32>
    %c0_23 = arith.constant 0 : index
    %c0_24 = arith.constant 0 : index
    %31 = vector.load %arg8[%c0_23, %c0_24] : memref<128x32xf32, #tpu.memory_space<vmem>>, vector<128x32xf32>
    %cst_25 = arith.constant dense<0.000000e+00> : vector<64x32xf32>
    %32 = tpu.matmul %30, %31, %cst_25 {dimension_numbers = #tpu.dot_dimension_numbers<[1], [0], [0], [1], [0, 0, 1, 1], [], []>} : vector<64x128xf32>, vector<128x32xf32>, vector<64x32xf32> -> vector<64x32xf32>
    %c0_26 = arith.constant 0 : index
    %c0_27 = arith.constant 0 : index
    %33 = vector.load %arg10[%c0_26, %c0_27] : memref<64x32xf32, #tpu.memory_space<vmem>>, vector<64x32xf32>
    %34 = arith.addf %32, %33 : vector<64x32xf32>
    %c0_28 = arith.constant 0 : index
    %c0_29 = arith.constant 0 : index
    %35 = vector.load %arg9[%c0_28, %c0_29] : memref<128x32xf32, #tpu.memory_space<vmem>>, vector<128x32xf32>
    %cst_30 = arith.constant dense<0.000000e+00> : vector<64x32xf32>
    %36 = tpu.matmul %30, %35, %cst_30 {dimension_numbers = #tpu.dot_dimension_numbers<[1], [0], [0], [1], [0, 0, 1, 1], [], []>} : vector<64x128xf32>, vector<128x32xf32>, vector<64x32xf32> -> vector<64x32xf32>
    %c0_31 = arith.constant 0 : index
    %c0_32 = arith.constant 0 : index
    %37 = vector.load %arg11[%c0_31, %c0_32] : memref<64x32xf32, #tpu.memory_space<vmem>>, vector<64x32xf32>
    %38 = arith.addf %36, %37 : vector<64x32xf32>
    %cst_33 = arith.constant 5.000000e-01 : f32
    %39 = vector.broadcast %cst_33 : f32 to vector<64x32xf32>
    %40 = arith.mulf %39, %38 : vector<64x32xf32>
    %41 = math.exp %40 : vector<64x32xf32>
    %cst_34 = arith.constant 1.000000e+00 : f32
    %42 = vector.broadcast %cst_34 : f32 to vector<64x32xf32>
    %43 = arith.addf %42, %38 : vector<64x32xf32>
    %44 = arith.mulf %34, %34 : vector<64x32xf32>
    %45 = arith.subf %43, %44 : vector<64x32xf32>
    %46 = arith.mulf %41, %41 : vector<64x32xf32>
    %47 = arith.subf %45, %46 : vector<64x32xf32>
    %48 = vector.shape_cast %47 : vector<64x32xf32> to vector<1x64x32xf32>
    %cst_35 = arith.constant dense<0.000000e+00> : vector<1xf32>
    %49 = vector.multi_reduction <add>, %48, %cst_35 [1, 2] : vector<1x64x32xf32> to vector<1xf32>
    %50 = vector.shape_cast %49 : vector<1xf32> to vector<1x1x1xf32>
    %51 = vector.extract %50[0, 0, 0] : f32 from vector<1x1x1xf32>
    %cst_36 = arith.constant -6.250000e-02 : f32
    %52 = arith.mulf %cst_36, %51 : f32
    %c0_37 = arith.constant 0 : index
    %c0_38 = arith.constant 0 : index
    %53 = memref.load %arg23[%c0_37, %c0_38] : memref<1x1xf32, #tpu.memory_space<smem>>
    memref.store %52, %arg23[%c0_37, %c0_38] : memref<1x1xf32, #tpu.memory_space<smem>>
    %c0_39 = arith.constant 0 : index
    %c0_40 = arith.constant 0 : index
    %54 = vector.load %arg12[%c0_39, %c0_40] : memref<64x4xf32, #tpu.memory_space<vmem>>, vector<64x4xf32>
    %c0_41 = arith.constant 0 : index
    %c0_42 = arith.constant 0 : index
    %55 = vector.load %arg13[%c0_41, %c0_42] : memref<4x256xf32, #tpu.memory_space<vmem>>, vector<4x256xf32>
    %cst_43 = arith.constant dense<0.000000e+00> : vector<64x256xf32>
    %56 = tpu.matmul %54, %55, %cst_43 {dimension_numbers = #tpu.dot_dimension_numbers<[1], [0], [0], [1], [0, 0, 1, 1], [], []>} : vector<64x4xf32>, vector<4x256xf32>, vector<64x256xf32> -> vector<64x256xf32>
    %c0_44 = arith.constant 0 : index
    %c0_45 = arith.constant 0 : index
    %57 = vector.load %arg14[%c0_44, %c0_45] : memref<64x32xf32, #tpu.memory_space<vmem>>, vector<64x32xf32>
    %c0_46 = arith.constant 0 : index
    %c0_47 = arith.constant 0 : index
    %58 = vector.load %arg15[%c0_46, %c0_47] : memref<32x32xbf16, #tpu.memory_space<vmem>>, vector<32x32xbf16>
    %c0_48 = arith.constant 0 : index
    %c0_49 = arith.constant 0 : index
    %59 = vector.load %arg16[%c0_48, %c0_49] : memref<1x32xf32, #tpu.memory_space<vmem>>, vector<1x32xf32>
    %c0_50 = arith.constant 0 : index
    %c0_51 = arith.constant 0 : index
    %60 = vector.load %arg17[%c0_50, %c0_51] : memref<1x32xf32, #tpu.memory_space<vmem>>, vector<1x32xf32>
    %c0_52 = arith.constant 0 : index
    %c0_53 = arith.constant 0 : index
    %61 = vector.load %arg18[%c0_52, %c0_53] : memref<1x32xf32, #tpu.memory_space<vmem>>, vector<1x32xf32>
    %c0_54 = arith.constant 0 : index
    %c0_55 = arith.constant 0 : index
    %62 = vector.load %arg19[%c0_54, %c0_55] : memref<128x64xf32, #tpu.memory_space<vmem>>, vector<128x64xf32>
    %c0_56 = arith.constant 0 : index
    %c0_57 = arith.constant 0 : index
    %63 = vector.load %arg20[%c0_56, %c0_57] : memref<32x64xbf16, #tpu.memory_space<vmem>>, vector<32x64xbf16>
    %cst_58 = arith.constant 0.000000e+00 : f32
    %64 = vector.broadcast %cst_58 : f32 to vector<128x64xf32>
    %65 = vector.extract_strided_slice %56 {offsets = [0, 0], sizes = [64, 32], strides = [1, 1]} : vector<64x256xf32> to vector<64x32xf32>
    %66 = arith.mulf %65, %41 : vector<64x32xf32>
    %67 = arith.addf %34, %66 : vector<64x32xf32>
    %68 = arith.addf %57, %67 : vector<64x32xf32>
    %69 = arith.truncf %68 : vector<64x32xf32> to vector<64x32xbf16>
    %cst_59 = arith.constant dense<0.000000e+00> : vector<64x32xf32>
    %70 = tpu.matmul %69, %58, %cst_59 {dimension_numbers = #tpu.dot_dimension_numbers<[1], [0], [0], [1], [0, 0, 1, 1], [], []>} : vector<64x32xbf16>, vector<32x32xbf16>, vector<64x32xf32> -> vector<64x32xf32>
    %71 = vector.broadcast %59 : vector<1x32xf32> to vector<64x32xf32>
    %72 = arith.addf %70, %71 : vector<64x32xf32>
    %73 = arith.mulf %72, %72 : vector<64x32xf32>
    %74 = arith.mulf %72, %73 : vector<64x32xf32>
    %cst_60 = arith.constant 4.471500e-02 : f32
    %75 = vector.broadcast %cst_60 : f32 to vector<64x32xf32>
    %76 = arith.mulf %75, %74 : vector<64x32xf32>
    %77 = arith.addf %72, %76 : vector<64x32xf32>
    %cst_61 = arith.constant 0.797884583 : f32
    %78 = vector.broadcast %cst_61 : f32 to vector<64x32xf32>
    %79 = arith.mulf %78, %77 : vector<64x32xf32>
    %80 = math.tanh %79 : vector<64x32xf32>
    %cst_62 = arith.constant 1.000000e+00 : f32
    %81 = vector.broadcast %cst_62 : f32 to vector<64x32xf32>
    %82 = arith.addf %81, %80 : vector<64x32xf32>
    %cst_63 = arith.constant 5.000000e-01 : f32
    %83 = vector.broadcast %cst_63 : f32 to vector<64x32xf32>
    %84 = arith.mulf %83, %82 : vector<64x32xf32>
    %85 = arith.mulf %72, %84 : vector<64x32xf32>
    %86 = arith.addf %68, %85 : vector<64x32xf32>
    %cst_64 = arith.constant dense<0.000000e+00> : vector<64xf32>
    %87 = vector.multi_reduction <add>, %86, %cst_64 [1] : vector<64x32xf32> to vector<64xf32>
    %88 = vector.shape_cast %87 : vector<64xf32> to vector<64x1xf32>
    %cst_65 = arith.constant 3.200000e+01 : f32
    %89 = vector.broadcast %cst_65 : f32 to vector<64x1xf32>
    %90 = arith.divf %88, %89 : vector<64x1xf32>
    %91 = vector.broadcast %90 : vector<64x1xf32> to vector<64x32xf32>
    %92 = arith.subf %86, %91 : vector<64x32xf32>
    %93 = vector.broadcast %90 : vector<64x1xf32> to vector<64x32xf32>
    %94 = arith.subf %86, %93 : vector<64x32xf32>
    %95 = arith.mulf %92, %94 : vector<64x32xf32>
    %cst_66 = arith.constant dense<0.000000e+00> : vector<64xf32>
    %96 = vector.multi_reduction <add>, %95, %cst_66 [1] : vector<64x32xf32> to vector<64xf32>
    %97 = vector.shape_cast %96 : vector<64xf32> to vector<64x1xf32>
    %cst_67 = arith.constant 3.200000e+01 : f32
    %98 = vector.broadcast %cst_67 : f32 to vector<64x1xf32>
    %99 = arith.divf %97, %98 : vector<64x1xf32>
    %100 = vector.broadcast %90 : vector<64x1xf32> to vector<64x32xf32>
    %101 = arith.subf %86, %100 : vector<64x32xf32>
    %cst_68 = arith.constant 9.99999974E-6 : f32
    %102 = vector.broadcast %cst_68 : f32 to vector<64x1xf32>
    %103 = arith.addf %99, %102 : vector<64x1xf32>
    %104 = math.rsqrt %103 : vector<64x1xf32>
    %105 = vector.broadcast %104 : vector<64x1xf32> to vector<64x32xf32>
    %106 = arith.mulf %101, %105 : vector<64x32xf32>
    %107 = vector.broadcast %60 : vector<1x32xf32> to vector<64x32xf32>
    %108 = arith.mulf %106, %107 : vector<64x32xf32>
    %109 = vector.broadcast %61 : vector<1x32xf32> to vector<64x32xf32>
    %110 = arith.addf %108, %109 : vector<64x32xf32>
    %cst_69 = arith.constant dense<0.000000e+00> : vector<128x32xf32>
    %111 = tpu.matmul %62, %110, %cst_69 {dimension_numbers = #tpu.dot_dimension_numbers<[1], [0], [0], [1], [0, 0, 1, 1], [], []>} : vector<128x64xf32>, vector<64x32xf32>, vector<128x32xf32> -> vector<128x32xf32>
    %112 = arith.truncf %111 : vector<128x32xf32> to vector<128x32xbf16>
    %cst_70 = arith.constant dense<0.000000e+00> : vector<128x64xf32>
    %113 = tpu.matmul %112, %63, %cst_70 {dimension_numbers = #tpu.dot_dimension_numbers<[1], [0], [0], [1], [0, 0, 1, 1], [], []>} : vector<128x32xbf16>, vector<32x64xbf16>, vector<128x64xf32> -> vector<128x64xf32>
    %114 = arith.mulf %113, %113 : vector<128x64xf32>
    %cst_71 = arith.constant dense<0.000000e+00> : vector<128xf32>
    %115 = vector.multi_reduction <add>, %114, %cst_71 [1] : vector<128x64xf32> to vector<128xf32>
    %116 = vector.shape_cast %115 : vector<128xf32> to vector<128x1xf32>
    %cst_72 = arith.constant 9.99999996E-13 : f32
    %117 = vector.broadcast %cst_72 : f32 to vector<128x1xf32>
    %118 = arith.addf %116, %117 : vector<128x1xf32>
    %119 = math.rsqrt %118 : vector<128x1xf32>
    %120 = vector.broadcast %119 : vector<128x1xf32> to vector<128x64xf32>
    %121 = arith.mulf %113, %120 : vector<128x64xf32>
    %122 = arith.addf %64, %121 : vector<128x64xf32>
    %123 = vector.extract_strided_slice %56 {offsets = [0, 128], sizes = [64, 32], strides = [1, 1]} : vector<64x256xf32> to vector<64x32xf32>
    %124 = arith.mulf %123, %41 : vector<64x32xf32>
    %125 = arith.addf %67, %124 : vector<64x32xf32>
    %126 = arith.addf %57, %125 : vector<64x32xf32>
    %127 = arith.truncf %126 : vector<64x32xf32> to vector<64x32xbf16>
    %cst_73 = arith.constant dense<0.000000e+00> : vector<64x32xf32>
    %128 = tpu.matmul %127, %58, %cst_73 {dimension_numbers = #tpu.dot_dimension_numbers<[1], [0], [0], [1], [0, 0, 1, 1], [], []>} : vector<64x32xbf16>, vector<32x32xbf16>, vector<64x32xf32> -> vector<64x32xf32>
    %129 = vector.broadcast %59 : vector<1x32xf32> to vector<64x32xf32>
    %130 = arith.addf %128, %129 : vector<64x32xf32>
    %131 = arith.mulf %130, %130 : vector<64x32xf32>
    %132 = arith.mulf %130, %131 : vector<64x32xf32>
    %cst_74 = arith.constant 4.471500e-02 : f32
    %133 = vector.broadcast %cst_74 : f32 to vector<64x32xf32>
    %134 = arith.mulf %133, %132 : vector<64x32xf32>
    %135 = arith.addf %130, %134 : vector<64x32xf32>
    %cst_75 = arith.constant 0.797884583 : f32
    %136 = vector.broadcast %cst_75 : f32 to vector<64x32xf32>
    %137 = arith.mulf %136, %135 : vector<64x32xf32>
    %138 = math.tanh %137 : vector<64x32xf32>
    %cst_76 = arith.constant 1.000000e+00 : f32
    %139 = vector.broadcast %cst_76 : f32 to vector<64x32xf32>
    %140 = arith.addf %139, %138 : vector<64x32xf32>
    %cst_77 = arith.constant 5.000000e-01 : f32
    %141 = vector.broadcast %cst_77 : f32 to vector<64x32xf32>
    %142 = arith.mulf %141, %140 : vector<64x32xf32>
    %143 = arith.mulf %130, %142 : vector<64x32xf32>
    %144 = arith.addf %126, %143 : vector<64x32xf32>
    %cst_78 = arith.constant dense<0.000000e+00> : vector<64xf32>
    %145 = vector.multi_reduction <add>, %144, %cst_78 [1] : vector<64x32xf32> to vector<64xf32>
    %146 = vector.shape_cast %145 : vector<64xf32> to vector<64x1xf32>
    %cst_79 = arith.constant 3.200000e+01 : f32
    %147 = vector.broadcast %cst_79 : f32 to vector<64x1xf32>
    %148 = arith.divf %146, %147 : vector<64x1xf32>
    %149 = vector.broadcast %148 : vector<64x1xf32> to vector<64x32xf32>
    %150 = arith.subf %144, %149 : vector<64x32xf32>
    %151 = vector.broadcast %148 : vector<64x1xf32> to vector<64x32xf32>
    %152 = arith.subf %144, %151 : vector<64x32xf32>
    %153 = arith.mulf %150, %152 : vector<64x32xf32>
    %cst_80 = arith.constant dense<0.000000e+00> : vector<64xf32>
    %154 = vector.multi_reduction <add>, %153, %cst_80 [1] : vector<64x32xf32> to vector<64xf32>
    %155 = vector.shape_cast %154 : vector<64xf32> to vector<64x1xf32>
    %cst_81 = arith.constant 3.200000e+01 : f32
    %156 = vector.broadcast %cst_81 : f32 to vector<64x1xf32>
    %157 = arith.divf %155, %156 : vector<64x1xf32>
    %158 = vector.broadcast %148 : vector<64x1xf32> to vector<64x32xf32>
    %159 = arith.subf %144, %158 : vector<64x32xf32>
    %cst_82 = arith.constant 9.99999974E-6 : f32
    %160 = vector.broadcast %cst_82 : f32 to vector<64x1xf32>
    %161 = arith.addf %157, %160 : vector<64x1xf32>
    %162 = math.rsqrt %161 : vector<64x1xf32>
    %163 = vector.broadcast %162 : vector<64x1xf32> to vector<64x32xf32>
    %164 = arith.mulf %159, %163 : vector<64x32xf32>
    %165 = vector.broadcast %60 : vector<1x32xf32> to vector<64x32xf32>
    %166 = arith.mulf %164, %165 : vector<64x32xf32>
    %167 = vector.broadcast %61 : vector<1x32xf32> to vector<64x32xf32>
    %168 = arith.addf %166, %167 : vector<64x32xf32>
    %cst_83 = arith.constant dense<0.000000e+00> : vector<128x32xf32>
    %169 = tpu.matmul %62, %168, %cst_83 {dimension_numbers = #tpu.dot_dimension_numbers<[1], [0], [0], [1], [0, 0, 1, 1], [], []>} : vector<128x64xf32>, vector<64x32xf32>, vector<128x32xf32> -> vector<128x32xf32>
    %170 = arith.truncf %169 : vector<128x32xf32> to vector<128x32xbf16>
    %cst_84 = arith.constant dense<0.000000e+00> : vector<128x64xf32>
    %171 = tpu.matmul %170, %63, %cst_84 {dimension_numbers = #tpu.dot_dimension_numbers<[1], [0], [0], [1], [0, 0, 1, 1], [], []>} : vector<128x32xbf16>, vector<32x64xbf16>, vector<128x64xf32> -> vector<128x64xf32>
    %172 = arith.mulf %171, %171 : vector<128x64xf32>
    %cst_85 = arith.constant dense<0.000000e+00> : vector<128xf32>
    %173 = vector.multi_reduction <add>, %172, %cst_85 [1] : vector<128x64xf32> to vector<128xf32>
    %174 = vector.shape_cast %173 : vector<128xf32> to vector<128x1xf32>
    %cst_86 = arith.constant 9.99999996E-13 : f32
    %175 = vector.broadcast %cst_86 : f32 to vector<128x1xf32>
    %176 = arith.addf %174, %175 : vector<128x1xf32>
    %177 = math.rsqrt %176 : vector<128x1xf32>
    %178 = vector.broadcast %177 : vector<128x1xf32> to vector<128x64xf32>
    %179 = arith.mulf %171, %178 : vector<128x64xf32>
    %180 = arith.addf %122, %179 : vector<128x64xf32>
    %cst_87 = arith.constant dense<0.000000e+00> : vector<2x128xf32>
    %181 = tpu.matmul %18, %180, %cst_87 {dimension_numbers = #tpu.dot_dimension_numbers<[1], [1], [0], [0], [0, 0, 1, 0], [], []>} : vector<2x64xf32>, vector<128x64xf32>, vector<2x128xf32> -> vector<2x128xf32>
    %c0_88 = arith.constant 0 : index
    %c0_89 = arith.constant 0 : index
    %182 = vector.load %arg22[%c0_88, %c0_89] : memref<2x128xf32, #tpu.memory_space<vmem>>, vector<2x128xf32>
    tpu.vector_store %arg22[%c0_88, %c0_89], %181 {strides = array<i32>} : memref<2x128xf32, #tpu.memory_space<vmem>>, vector<2x128xf32>,
    return
  }
}

</mosaic_0001>

<llo_original>
// kernel: clip_lrn_promptg_forward.1
$region0: #{clip_lrn_promptg_forward.1}
  #allocation0 [shape = 'u32[]', space=smem, size = 0x4, offset = 0x4, fixed_abs, tag = 'smem constant byte address 0x4 - core index']
  #allocation1 [shape = 'u32[72,128]{1,0:T(1,128)}', space=vmem, size = 0x9000, scoped, tag = 'internal scratch']
  #allocation2 [shape = 'f32[1,1]{1,0:T(1,128)S(6)}', space=smem, size = 0x200, scoped, tag = 'scoped memory for clip_lrn_promptg_forward.1']
  %s0 = inlined_call_operand.vmem [shape: bf16[2,768], index: 0, kind: input, shape index: {}]
  %s1 = inlined_call_operand.vmem [shape: bf16[768,64], index: 1, kind: input, shape index: {}]
  %s2 = inlined_call_operand.vmem [shape: f32[1,64], index: 2, kind: input, shape index: {}]
  %s3 = inlined_call_operand.vmem [shape: f32[1,16], index: 3, kind: input, shape index: {}]
  %s4 = inlined_call_operand.vmem [shape: f32[16,32], index: 4, kind: input, shape index: {}]
  %s5 = inlined_call_operand.vmem [shape: f32[1,32], index: 5, kind: input, shape index: {}]
  %s6 = inlined_call_operand.vmem [shape: f32[32,128], index: 6, kind: input, shape index: {}]
  %s7 = inlined_call_operand.vmem [shape: f32[64,128], index: 7, kind: input, shape index: {}]
  %s8 = inlined_call_operand.vmem [shape: f32[128,32], index: 8, kind: input, shape index: {}]
  %s9 = inlined_call_operand.vmem [shape: f32[128,32], index: 9, kind: input, shape index: {}]
  %s10 = inlined_call_operand.vmem [shape: f32[64,32], index: 10, kind: input, shape index: {}]
  %s11 = inlined_call_operand.vmem [shape: f32[64,32], index: 11, kind: input, shape index: {}]
  %s12 = inlined_call_operand.vmem [shape: f32[64,4], index: 12, kind: input, shape index: {}]
  %s13 = inlined_call_operand.vmem [shape: f32[4,256], index: 13, kind: input, shape index: {}]
  %s14 = inlined_call_operand.vmem [shape: f32[64,32], index: 14, kind: input, shape index: {}]
  %s15 = inlined_call_operand.vmem [shape: bf16[32,32], index: 15, kind: input, shape index: {}]
  %s16 = inlined_call_operand.vmem [shape: f32[1,32], index: 16, kind: input, shape index: {}]
  %s17 = inlined_call_operand.vmem [shape: f32[1,32], index: 17, kind: input, shape index: {}]
  %s18 = inlined_call_operand.vmem [shape: f32[1,32], index: 18, kind: input, shape index: {}]
  %s19 = inlined_call_operand.vmem [shape: f32[128,64], index: 19, kind: input, shape index: {}]
  %s20 = inlined_call_operand.vmem [shape: bf16[32,64], index: 20, kind: input, shape index: {}]
  %s21 = inlined_call_operand.<no memory space> [shape: f32[1,1], index: 21, kind: input, shape index: {}]
  %s22 = inlined_call_operand.hbm [shape: f32[2,128], index: 22, kind: output, shape index: {0}]
  %s23 = inlined_call_operand.hbm [shape: f32[1,1], index: 23, kind: output, shape index: {1}]
  %24 = xla_tuple %s22, %s23
  %s25 = sld [smem:[#allocation0]]
  $region106: #{clip_lrn_promptg_forward.1} parent=0
    _
  %s27 = ssub.s32 1, %s25
  %s28 = scalar_select 0, %s27, %s25
  %29 = sst [smem:[#allocation2]] %s21
  $region1: #{clip_lrn_promptg_forward.1} parent=0
    #allocation3 [shape = 'u8[1024]{0}', space=vmem, size = 0x400, scoped, tag = 'output window, operand 0, single buffered']
    #allocation4 [shape = 's32[1]{0}', space=sflag, size = 0x4, scoped, tag = 'scoped memory for clip_lrn_promptg_forward.1']
    #allocation5 [shape = 's32[1]{0}', space=sflag, size = 0x4, scoped, tag = 'scoped memory for clip_lrn_promptg_forward.1']
    #allocation6 [shape = 'u8[512]{0}', space=smem, size = 0x200, scoped, tag = 'output window, operand 1, single buffered']
    %30 = vsyncpa [#allocation4], 0
    %31 = vsyncpa [#allocation5], 0
    // Predicated region
    $region2: #{clip_lrn_promptg_forward.1} parent=1 // pred_check
      _
    $region3: #{clip_lrn_promptg_forward.1} parent=1 // pred_check_branch
      %33 = sbr.rel (0) target = $region5
    $region4: #{clip_lrn_promptg_forward.1} parent=1 // pred_region
      _
    $region5: #{clip_lrn_promptg_forward.1} parent=1 // pred_fallthru
      _
    // Predicated region
    $region6: #{clip_lrn_promptg_forward.1} parent=1 // pred_check
      _
    $region7: #{clip_lrn_promptg_forward.1} parent=1 // pred_check_branch
      %35 = sbr.rel (0) target = $region9
    $region8: #{clip_lrn_promptg_forward.1} parent=1 // pred_region
      _
    $region9: #{clip_lrn_promptg_forward.1} parent=1 // pred_fallthru
      _
    // Predicated region
    $region10: #{clip_lrn_promptg_forward.1} parent=1 // pred_check
      _
    $region11: #{clip_lrn_promptg_forward.1} parent=1 // pred_check_branch
      %37 = sbr.rel (0) target = $region13
    $region12: #{clip_lrn_promptg_forward.1} parent=1 // pred_region
      _
    $region13: #{clip_lrn_promptg_forward.1} parent=1 // pred_fallthru
      _
    // Predicated region
    $region14: #{clip_lrn_promptg_forward.1} parent=1 // pred_check
      _
    $region15: #{clip_lrn_promptg_forward.1} parent=1 // pred_check_branch
      %39 = sbr.rel (0) target = $region17
    $region16: #{clip_lrn_promptg_forward.1} parent=1 // pred_region
      _
    $region17: #{clip_lrn_promptg_forward.1} parent=1 // pred_fallthru
      _
    // Predicated region
    $region18: #{clip_lrn_promptg_forward.1} parent=1 // pred_check
      _
    $region19: #{clip_lrn_promptg_forward.1} parent=1 // pred_check_branch
      %41 = sbr.rel (0) target = $region21
    $region20: #{clip_lrn_promptg_forward.1} parent=1 // pred_region
      _
    $region21: #{clip_lrn_promptg_forward.1} parent=1 // pred_fallthru
      _
    // Predicated region
    $region22: #{clip_lrn_promptg_forward.1} parent=1 // pred_check
      _
    $region23: #{clip_lrn_promptg_forward.1} parent=1 // pred_check_branch
      %43 = sbr.rel (0) target = $region25
    $region24: #{clip_lrn_promptg_forward.1} parent=1 // pred_region
      _
    $region25: #{clip_lrn_promptg_forward.1} parent=1 // pred_fallthru
      _
    // Predicated region
    $region26: #{clip_lrn_promptg_forward.1} parent=1 // pred_check
      _
    $region27: #{clip_lrn_promptg_forward.1} parent=1 // pred_check_branch
      %45 = sbr.rel (0) target = $region29
    $region28: #{clip_lrn_promptg_forward.1} parent=1 // pred_region
      _
    $region29: #{clip_lrn_promptg_forward.1} parent=1 // pred_fallthru
      _
    // Predicated region
    $region30: #{clip_lrn_promptg_forward.1} parent=1 // pred_check
      _
    $region31: #{clip_lrn_promptg_forward.1} parent=1 // pred_check_branch
      %47 = sbr.rel (0) target = $region33
    $region32: #{clip_lrn_promptg_forward.1} parent=1 // pred_region
      _
    $region33: #{clip_lrn_promptg_forward.1} parent=1 // pred_fallthru
      _
    // Predicated region
    $region34: #{clip_lrn_promptg_forward.1} parent=1 // pred_check
      _
    $region35: #{clip_lrn_promptg_forward.1} parent=1 // pred_check_branch
      %49 = sbr.rel (0) target = $region37
    $region36: #{clip_lrn_promptg_forward.1} parent=1 // pred_region
      _
    $region37: #{clip_lrn_promptg_forward.1} parent=1 // pred_fallthru
      _
    // Predicated region
    $region38: #{clip_lrn_promptg_forward.1} parent=1 // pred_check
      _
    $region39: #{clip_lrn_promptg_forward.1} parent=1 // pred_check_branch
      %51 = sbr.rel (0) target = $region41
    $region40: #{clip_lrn_promptg_forward.1} parent=1 // pred_region
      _
    $region41: #{clip_lrn_promptg_forward.1} parent=1 // pred_fallthru
      _
    // Predicated region
    $region42: #{clip_lrn_promptg_forward.1} parent=1 // pred_check
      _
    $region43: #{clip_lrn_promptg_forward.1} parent=1 // pred_check_branch
      %53 = sbr.rel (0) target = $region45
    $region44: #{clip_lrn_promptg_forward.1} parent=1 // pred_region
      _
    $region45: #{clip_lrn_promptg_forward.1} parent=1 // pred_fallthru
      _
    // Predicated region
    $region46: #{clip_lrn_promptg_forward.1} parent=1 // pred_check
      _
    $region47: #{clip_lrn_promptg_forward.1} parent=1 // pred_check_branch
      %55 = sbr.rel (0) target = $region49
    $region48: #{clip_lrn_promptg_forward.1} parent=1 // pred_region
      _
    $region49: #{clip_lrn_promptg_forward.1} parent=1 // pred_fallthru
      _
    // Predicated region
    $region50: #{clip_lrn_promptg_forward.1} parent=1 // pred_check
      _
    $region51: #{clip_lrn_promptg_forward.1} parent=1 // pred_check_branch
      %57 = sbr.rel (0) target = $region53
    $region52: #{clip_lrn_promptg_forward.1} parent=1 // pred_region
      _
    $region53: #{clip_lrn_promptg_forward.1} parent=1 // pred_fallthru
      _
    // Predicated region
    $region54: #{clip_lrn_promptg_forward.1} parent=1 // pred_check
      _
    $region55: #{clip_lrn_promptg_forward.1} parent=1 // pred_check_branch
      %59 = sbr.rel (0) target = $region57
    $region56: #{clip_lrn_promptg_forward.1} parent=1 // pred_region
      _
    $region57: #{clip_lrn_promptg_forward.1} parent=1 // pred_fallthru
      _
    // Predicated region
    $region58: #{clip_lrn_promptg_forward.1} parent=1 // pred_check
      _
    $region59: #{clip_lrn_promptg_forward.1} parent=1 // pred_check_branch
      %61 = sbr.rel (0) target = $region61
    $region60: #{clip_lrn_promptg_forward.1} parent=1 // pred_region
      _
    $region61: #{clip_lrn_promptg_forward.1} parent=1 // pred_fallthru
      _
    // Predicated region
    $region62: #{clip_lrn_promptg_forward.1} parent=1 // pred_check
      _
    $region63: #{clip_lrn_promptg_forward.1} parent=1 // pred_check_branch
      %63 = sbr.rel (0) target = $region65
    $region64: #{clip_lrn_promptg_forward.1} parent=1 // pred_region
      _
    $region65: #{clip_lrn_promptg_forward.1} parent=1 // pred_fallthru
      _
    // Predicated region
    $region66: #{clip_lrn_promptg_forward.1} parent=1 // pred_check
      _
    $region67: #{clip_lrn_promptg_forward.1} parent=1 // pred_check_branch
      %65 = sbr.rel (0) target = $region69
    $region68: #{clip_lrn_promptg_forward.1} parent=1 // pred_region
      _
    $region69: #{clip_lrn_promptg_forward.1} parent=1 // pred_fallthru
      _
    // Predicated region
    $region70: #{clip_lrn_promptg_forward.1} parent=1 // pred_check
      _
    $region71: #{clip_lrn_promptg_forward.1} parent=1 // pred_check_branch
      %67 = sbr.rel (0) target = $region73
    $region72: #{clip_lrn_promptg_forward.1} parent=1 // pred_region
      _
    $region73: #{clip_lrn_promptg_forward.1} parent=1 // pred_fallthru
      _
    // Predicated region
    $region74: #{clip_lrn_promptg_forward.1} parent=1 // pred_check
      _
    $region75: #{clip_lrn_promptg_forward.1} parent=1 // pred_check_branch
      %69 = sbr.rel (0) target = $region77
    $region76: #{clip_lrn_promptg_forward.1} parent=1 // pred_region
      _
    $region77: #{clip_lrn_promptg_forward.1} parent=1 // pred_fallthru
      _
    // Predicated region
    $region78: #{clip_lrn_promptg_forward.1} parent=1 // pred_check
      _
    $region79: #{clip_lrn_promptg_forward.1} parent=1 // pred_check_branch
      %71 = sbr.rel (0) target = $region81
    $region80: #{clip_lrn_promptg_forward.1} parent=1 // pred_region
      _
    $region81: #{clip_lrn_promptg_forward.1} parent=1 // pred_fallthru
      _
    // Predicated region
    $region82: #{clip_lrn_promptg_forward.1} parent=1 // pred_check
      _
    $region83: #{clip_lrn_promptg_forward.1} parent=1 // pred_check_branch
      %73 = sbr.rel (0) target = $region85
    $region84: #{clip_lrn_promptg_forward.1} parent=1 // pred_region
      _
    $region85: #{clip_lrn_promptg_forward.1} parent=1 // pred_fallthru
      _
    // Predicated region
    $region86: #{clip_lrn_promptg_forward.1} parent=1 // pred_check
      _
    $region87: #{clip_lrn_promptg_forward.1} parent=1 // pred_check_branch
      %75 = sbr.rel (0) target = $region89
    $region88: #{clip_lrn_promptg_forward.1} parent=1 // pred_region
      _
    $region89: #{clip_lrn_promptg_forward.1} parent=1 // pred_fallthru
      _
    %v77 = vld [vmem:[%s0] sm:$0x3f]
    %v78 = vld [vmem:[%s1] sm:$0xf]
    %v79 = vld [vmem:[%s1 + $0x4] sm:$0xf]
    %v80 = vld [vmem:[%s1 + $0x8] sm:$0xf]
    %v81 = vld [vmem:[%s1 + $0xc] sm:$0xf]
    %v82 = vld [vmem:[%s1 + $0x10] sm:$0xf]
    %v83 = vld [vmem:[%s1 + $0x14] sm:$0xf]
    %v84 = vld [vmem:[%s1 + $0x18] sm:$0xf]
    %v85 = vld [vmem:[%s1 + $0x1c] sm:$0xf]
    %v86 = vld [vmem:[%s1 + $0x20] sm:$0xf]
    %v87 = vld [vmem:[%s1 + $0x24] sm:$0xf]
    %v88 = vld [vmem:[%s1 + $0x28] sm:$0xf]
    %v89 = vld [vmem:[%s1 + $0x2c] sm:$0xf]
    %v90 = vld [vmem:[%s1 + $0x30] sm:$0xf]
    %v91 = vld [vmem:[%s1 + $0x34] sm:$0xf]
    %v92 = vld [vmem:[%s1 + $0x38] sm:$0xf]
    %v93 = vld [vmem:[%s1 + $0x3c] sm:$0xf]
    %v94 = vld [vmem:[%s1 + $0x40] sm:$0xf]
    %v95 = vld [vmem:[%s1 + $0x44] sm:$0xf]
    %v96 = vld [vmem:[%s1 + $0x48] sm:$0xf]
    %v97 = vld [vmem:[%s1 + $0x4c] sm:$0xf]
    %v98 = vld [vmem:[%s1 + $0x50] sm:$0xf]
    %v99 = vld [vmem:[%s1 + $0x54] sm:$0xf]
    %v100 = vld [vmem:[%s1 + $0x58] sm:$0xf]
    %v101 = vld [vmem:[%s1 + $0x5c] sm:$0xf]
    %v102 = vld [vmem:[%s1 + $0x60] sm:$0xf]
    %v103 = vld [vmem:[%s1 + $0x64] sm:$0xf]
    %v104 = vld [vmem:[%s1 + $0x68] sm:$0xf]
    %v105 = vld [vmem:[%s1 + $0x6c] sm:$0xf]
    %v106 = vld [vmem:[%s1 + $0x70] sm:$0xf]
    %v107 = vld [vmem:[%s1 + $0x74] sm:$0xf]
    %v108 = vld [vmem:[%s1 + $0x78] sm:$0xf]
    %v109 = vld [vmem:[%s1 + $0x7c] sm:$0xf]
    %v110 = vld [vmem:[%s1 + $0x80] sm:$0xf]
    %v111 = vld [vmem:[%s1 + $0x84] sm:$0xf]
    %v112 = vld [vmem:[%s1 + $0x88] sm:$0xf]
    %v113 = vld [vmem:[%s1 + $0x8c] sm:$0xf]
    %v114 = vld [vmem:[%s1 + $0x90] sm:$0xf]
    %v115 = vld [vmem:[%s1 + $0x94] sm:$0xf]
    %v116 = vld [vmem:[%s1 + $0x98] sm:$0xf]
    %v117 = vld [vmem:[%s1 + $0x9c] sm:$0xf]
    %v118 = vld [vmem:[%s1 + $0xa0] sm:$0xf]
    %v119 = vld [vmem:[%s1 + $0xa4] sm:$0xf]
    %v120 = vld [vmem:[%s1 + $0xa8] sm:$0xf]
    %v121 = vld [vmem:[%s1 + $0xac] sm:$0xf]
    %v122 = vld [vmem:[%s1 + $0xb0] sm:$0xf]
    %v123 = vld [vmem:[%s1 + $0xb4] sm:$0xf]
    %v124 = vld [vmem:[%s1 + $0xb8] sm:$0xf]
    %v125 = vld [vmem:[%s1 + $0xbc] sm:$0xf]
    %v126 = vld [vmem:[%s1 + $0xc0] sm:$0xf]
    %v127 = vld [vmem:[%s1 + $0xc4] sm:$0xf]
    %v128 = vld [vmem:[%s1 + $0xc8] sm:$0xf]
    %v129 = vld [vmem:[%s1 + $0xcc] sm:$0xf]
    %v130 = vld [vmem:[%s1 + $0xd0] sm:$0xf]
    %v131 = vld [vmem:[%s1 + $0xd4] sm:$0xf]
    %v132 = vld [vmem:[%s1 + $0xd8] sm:$0xf]
    %v133 = vld [vmem:[%s1 + $0xdc] sm:$0xf]
    %v134 = vld [vmem:[%s1 + $0xe0] sm:$0xf]
    %v135 = vld [vmem:[%s1 + $0xe4] sm:$0xf]
    %v136 = vld [vmem:[%s1 + $0xe8] sm:$0xf]
    %v137 = vld [vmem:[%s1 + $0xec] sm:$0xf]
    %v138 = vld [vmem:[%s1 + $0xf0] sm:$0xf]
    %v139 = vld [vmem:[%s1 + $0xf4] sm:$0xf]
    %v140 = vld [vmem:[%s1 + $0xf8] sm:$0xf]
    %v141 = vld [vmem:[%s1 + $0xfc] sm:$0xf]
    %v142 = vld [vmem:[%s1 + $0x100] sm:$0xf]
    %v143 = vld [vmem:[%s1 + $0x104] sm:$0xf]
    %v144 = vld [vmem:[%s1 + $0x108] sm:$0xf]
    %v145 = vld [vmem:[%s1 + $0x10c] sm:$0xf]
    %v146 = vld [vmem:[%s1 + $0x110] sm:$0xf]
    %v147 = vld [vmem:[%s1 + $0x114] sm:$0xf]
    %v148 = vld [vmem:[%s1 + $0x118] sm:$0xf]
    %v149 = vld [vmem:[%s1 + $0x11c] sm:$0xf]
    %v150 = vld [vmem:[%s1 + $0x120] sm:$0xf]
    %v151 = vld [vmem:[%s1 + $0x124] sm:$0xf]
    %v152 = vld [vmem:[%s1 + $0x128] sm:$0xf]
    %v153 = vld [vmem:[%s1 + $0x12c] sm:$0xf]
    %v154 = vld [vmem:[%s1 + $0x130] sm:$0xf]
    %v155 = vld [vmem:[%s1 + $0x134] sm:$0xf]
    %v156 = vld [vmem:[%s1 + $0x138] sm:$0xf]
    %v157 = vld [vmem:[%s1 + $0x13c] sm:$0xf]
    %v158 = vld [vmem:[%s1 + $0x140] sm:$0xf]
    %v159 = vld [vmem:[%s1 + $0x144] sm:$0xf]
    %v160 = vld [vmem:[%s1 + $0x148] sm:$0xf]
    %v161 = vld [vmem:[%s1 + $0x14c] sm:$0xf]
    %v162 = vld [vmem:[%s1 + $0x150] sm:$0xf]
    %v163 = vld [vmem:[%s1 + $0x154] sm:$0xf]
    %v164 = vld [vmem:[%s1 + $0x158] sm:$0xf]
    %v165 = vld [vmem:[%s1 + $0x15c] sm:$0xf]
    %v166 = vld [vmem:[%s1 + $0x160] sm:$0xf]
    %v167 = vld [vmem:[%s1 + $0x164] sm:$0xf]
    %v168 = vld [vmem:[%s1 + $0x168] sm:$0xf]
    %v169 = vld [vmem:[%s1 + $0x16c] sm:$0xf]
    %v170 = vld [vmem:[%s1 + $0x170] sm:$0xf]
    %v171 = vld [vmem:[%s1 + $0x174] sm:$0xf]
    %v172 = vld [vmem:[%s1 + $0x178] sm:$0xf]
    %v173 = vld [vmem:[%s1 + $0x17c] sm:$0xf]
    %v174 = vld [vmem:[%s2] sm:$0x1]
    %v176 = vperm.slane %v174, 0
    %179 = vst [vmem:[#allocation1] ss:$9 sm:$0xff] %v77
    %v180 = vld [vmem:[#allocation1] sm:$0xff]
    %v181 = vld [vmem:[#allocation1 + $0x9] sm:$0xff]
    %v182 = vld [vmem:[#allocation1 + $0x12] sm:$0xff]
    %v183 = vld [vmem:[#allocation1 + $0x1b] sm:$0xff]
    %v184 = vld [vmem:[#allocation1 + $0x24] sm:$0xff]
    %v185 = vld [vmem:[#allocation1 + $0x2d] sm:$0xff]
    %v288 = vunpack.c.l.b16 %v78
    %v289 = vunpack.c.l.b16 %v79
    %v290 = vunpack.c.l.b16 %v80
    %v291 = vunpack.c.l.b16 %v81
    %v292 = vunpack.c.l.b16 %v82
    %v293 = vunpack.c.l.b16 %v83
    %v294 = vunpack.c.l.b16 %v84
    %v295 = vunpack.c.l.b16 %v85
    %v296 = vunpack.c.l.b16 %v86
    %v297 = vunpack.c.l.b16 %v87
    %v298 = vunpack.c.l.b16 %v88
    %v299 = vunpack.c.l.b16 %v89
    %v300 = vunpack.c.l.b16 %v90
    %v301 = vunpack.c.l.b16 %v91
    %v302 = vunpack.c.l.b16 %v92
    %v303 = vunpack.c.l.b16 %v93
    %v304 = vunpack.c.l.b16 %v94
    %v305 = vunpack.c.l.b16 %v95
    %v306 = vunpack.c.l.b16 %v96
    %v307 = vunpack.c.l.b16 %v97
    %v308 = vunpack.c.l.b16 %v98
    %v309 = vunpack.c.l.b16 %v99
    %v310 = vunpack.c.l.b16 %v100
    %v311 = vunpack.c.l.b16 %v101
    %v312 = vunpack.c.l.b16 %v102
    %v313 = vunpack.c.l.b16 %v103
    %v314 = vunpack.c.l.b16 %v104
    %v315 = vunpack.c.l.b16 %v105
    %v316 = vunpack.c.l.b16 %v106
    %v317 = vunpack.c.l.b16 %v107
    %v318 = vunpack.c.l.b16 %v108
    %v319 = vunpack.c.l.b16 %v109
    %v320 = vunpack.c.l.b16 %v110
    %v321 = vunpack.c.l.b16 %v111
    %v322 = vunpack.c.l.b16 %v112
    %v323 = vunpack.c.l.b16 %v113
    %v324 = vunpack.c.l.b16 %v114
    %v325 = vunpack.c.l.b16 %v115
    %v326 = vunpack.c.l.b16 %v116
    %v327 = vunpack.c.l.b16 %v117
    %v328 = vunpack.c.l.b16 %v118
    %v329 = vunpack.c.l.b16 %v119
    %v330 = vunpack.c.l.b16 %v120
    %v331 = vunpack.c.l.b16 %v121
    %v332 = vunpack.c.l.b16 %v122
    %v333 = vunpack.c.l.b16 %v123
    %v334 = vunpack.c.l.b16 %v124
    %v335 = vunpack.c.l.b16 %v125
    %v336 = vunpack.c.l.b16 %v126
    %v337 = vunpack.c.l.b16 %v127
    %v338 = vunpack.c.l.b16 %v128
    %v339 = vunpack.c.l.b16 %v129
    %v340 = vunpack.c.l.b16 %v130
    %v341 = vunpack.c.l.b16 %v131
    %v342 = vunpack.c.l.b16 %v132
    %v343 = vunpack.c.l.b16 %v133
    %v344 = vunpack.c.l.b16 %v134
    %v345 = vunpack.c.l.b16 %v135
    %v346 = vunpack.c.l.b16 %v136
    %v347 = vunpack.c.l.b16 %v137
    %v348 = vunpack.c.l.b16 %v138
    %v349 = vunpack.c.l.b16 %v139
    %v350 = vunpack.c.l.b16 %v140
    %v351 = vunpack.c.l.b16 %v141
    %v352 = vunpack.c.l.b16 %v142
    %v353 = vunpack.c.l.b16 %v143
    %v354 = vunpack.c.l.b16 %v144
    %v355 = vunpack.c.l.b16 %v145
    %v356 = vunpack.c.l.b16 %v146
    %v357 = vunpack.c.l.b16 %v147
    %v358 = vunpack.c.l.b16 %v148
    %v359 = vunpack.c.l.b16 %v149
    %v360 = vunpack.c.l.b16 %v150
    %v361 = vunpack.c.l.b16 %v151
    %v362 = vunpack.c.l.b16 %v152
    %v363 = vunpack.c.l.b16 %v153
    %v364 = vunpack.c.l.b16 %v154
    %v365 = vunpack.c.l.b16 %v155
    %v366 = vunpack.c.l.b16 %v156
    %v367 = vunpack.c.l.b16 %v157
    %v368 = vunpack.c.l.b16 %v158
    %v369 = vunpack.c.l.b16 %v159
    %v370 = vunpack.c.l.b16 %v160
    %v371 = vunpack.c.l.b16 %v161
    %v372 = vunpack.c.l.b16 %v162
    %v373 = vunpack.c.l.b16 %v163
    %v374 = vunpack.c.l.b16 %v164
    %v375 = vunpack.c.l.b16 %v165
    %v376 = vunpack.c.l.b16 %v166
    %v377 = vunpack.c.l.b16 %v167
    %v378 = vunpack.c.l.b16 %v168
    %v379 = vunpack.c.l.b16 %v169
    %v380 = vunpack.c.l.b16 %v170
    %v381 = vunpack.c.l.b16 %v171
    %v382 = vunpack.c.l.b16 %v172
    %v383 = vunpack.c.l.b16 %v173
    %v384 = vpack.c.b16 %v289, %v288
    %v385 = vpack.c.b16 %v291, %v290
    %v386 = vpack.c.b16 %v293, %v292
    %v387 = vpack.c.b16 %v295, %v294
    %v388 = vpack.c.b16 %v297, %v296
    %v389 = vpack.c.b16 %v299, %v298
    %v390 = vpack.c.b16 %v301, %v300
    %v391 = vpack.c.b16 %v303, %v302
    %v392 = vpack.c.b16 %v305, %v304
    %v393 = vpack.c.b16 %v307, %v306
    %v394 = vpack.c.b16 %v309, %v308
    %v395 = vpack.c.b16 %v311, %v310
    %v396 = vpack.c.b16 %v313, %v312
    %v397 = vpack.c.b16 %v315, %v314
    %v398 = vpack.c.b16 %v317, %v316
    %v399 = vpack.c.b16 %v319, %v318
    %v400 = vpack.c.b16 %v321, %v320
    %v401 = vpack.c.b16 %v323, %v322
    %v402 = vpack.c.b16 %v325, %v324
    %v403 = vpack.c.b16 %v327, %v326
    %v404 = vpack.c.b16 %v329, %v328
    %v405 = vpack.c.b16 %v331, %v330
    %v406 = vpack.c.b16 %v333, %v332
    %v407 = vpack.c.b16 %v335, %v334
    %v408 = vpack.c.b16 %v337, %v336
    %v409 = vpack.c.b16 %v339, %v338
    %v410 = vpack.c.b16 %v341, %v340
    %v411 = vpack.c.b16 %v343, %v342
    %v412 = vpack.c.b16 %v345, %v344
    %v413 = vpack.c.b16 %v347, %v346
    %v414 = vpack.c.b16 %v349, %v348
    %v415 = vpack.c.b16 %v351, %v350
    %v416 = vpack.c.b16 %v353, %v352
    %v417 = vpack.c.b16 %v355, %v354
    %v418 = vpack.c.b16 %v357, %v356
    %v419 = vpack.c.b16 %v359, %v358
    %v420 = vpack.c.b16 %v361, %v360
    %v421 = vpack.c.b16 %v363, %v362
    %v422 = vpack.c.b16 %v365, %v364
    %v423 = vpack.c.b16 %v367, %v366
    %v424 = vpack.c.b16 %v369, %v368
    %v425 = vpack.c.b16 %v371, %v370
    %v426 = vpack.c.b16 %v373, %v372
    %v427 = vpack.c.b16 %v375, %v374
    %v428 = vpack.c.b16 %v377, %v376
    %v429 = vpack.c.b16 %v379, %v378
    %v430 = vpack.c.b16 %v381, %v380
    %v431 = vpack.c.b16 %v383, %v382
    %480 = vmatpush.bf16.msra.mxu0 %v391
    %481 = vmatpush.bf16.msra.mxu0 %v390
    %482 = vmatpush.bf16.msra.mxu0 %v389
    %483 = vmatpush.bf16.msra.mxu0 %v388
    %484 = vmatpush.bf16.msra.mxu0 %v387
    %485 = vmatpush.bf16.msra.mxu0 %v386
    %486 = vmatpush.bf16.msra.mxu0 %v385
    %487 = vmatpush.bf16.msra.mxu0 %v384
    %488 = vmatmul.bf16.gmra.mxu0 %v180
    %v489 = vpop.f32.mrf.mxu0
    %v490 = vadd.f32 %v176, %v489
    %v491 = vpop.f32.mrf.mxu0
    %492 = vdwg.mxu0
    %493 = vmatpush.bf16.msra.mxu0 %v399
    %494 = vmatpush.bf16.msra.mxu0 %v398
    %495 = vmatpush.bf16.msra.mxu0 %v397
    %496 = vmatpush.bf16.msra.mxu0 %v396
    %497 = vmatpush.bf16.msra.mxu0 %v395
    %498 = vmatpush.bf16.msra.mxu0 %v394
    %499 = vmatpush.bf16.msra.mxu0 %v393
    %500 = vmatpush.bf16.msra.mxu0 %v392
    %501 = vmatmul.bf16.gmra.mxu0 %v181
    %v502 = vpop.f32.mrf.mxu0
    %v503 = vadd.f32 %v490, %v502
    %v504 = vpop.f32.mrf.mxu0
    %505 = vdwg.mxu0
    %506 = vmatpush.bf16.msra.mxu0 %v407
    %507 = vmatpush.bf16.msra.mxu0 %v406
    %508 = vmatpush.bf16.msra.mxu0 %v405
    %509 = vmatpush.bf16.msra.mxu0 %v404
    %510 = vmatpush.bf16.msra.mxu0 %v403
    %511 = vmatpush.bf16.msra.mxu0 %v402
    %512 = vmatpush.bf16.msra.mxu0 %v401
    %513 = vmatpush.bf16.msra.mxu0 %v400
    %514 = vmatmul.bf16.gmra.mxu0 %v182
    %v515 = vpop.f32.mrf.mxu0
    %v516 = vadd.f32 %v503, %v515
    %v517 = vpop.f32.mrf.mxu0
    %518 = vdwg.mxu0
    %519 = vmatpush.bf16.msra.mxu0 %v415
    %520 = vmatpush.bf16.msra.mxu0 %v414
    %521 = vmatpush.bf16.msra.mxu0 %v413
    %522 = vmatpush.bf16.msra.mxu0 %v412
    %523 = vmatpush.bf16.msra.mxu0 %v411
    %524 = vmatpush.bf16.msra.mxu0 %v410
    %525 = vmatpush.bf16.msra.mxu0 %v409
    %526 = vmatpush.bf16.msra.mxu0 %v408
    %527 = vmatmul.bf16.gmra.mxu0 %v183
    %v528 = vpop.f32.mrf.mxu0
    %v529 = vadd.f32 %v516, %v528
    %v530 = vpop.f32.mrf.mxu0
    %531 = vdwg.mxu0
    %532 = vmatpush.bf16.msra.mxu0 %v423
    %533 = vmatpush.bf16.msra.mxu0 %v422
    %534 = vmatpush.bf16.msra.mxu0 %v421
    %535 = vmatpush.bf16.msra.mxu0 %v420
    %536 = vmatpush.bf16.msra.mxu0 %v419
    %537 = vmatpush.bf16.msra.mxu0 %v418
    %538 = vmatpush.bf16.msra.mxu0 %v417
    %539 = vmatpush.bf16.msra.mxu0 %v416
    %540 = vmatmul.bf16.gmra.mxu0 %v184
    %v541 = vpop.f32.mrf.mxu0
    %v542 = vadd.f32 %v529, %v541
    %v543 = vpop.f32.mrf.mxu0
    %544 = vdwg.mxu0
    %545 = vmatpush.bf16.msra.mxu0 %v431
    %546 = vmatpush.bf16.msra.mxu0 %v430
    %547 = vmatpush.bf16.msra.mxu0 %v429
    %548 = vmatpush.bf16.msra.mxu0 %v428
    %549 = vmatpush.bf16.msra.mxu0 %v427
    %550 = vmatpush.bf16.msra.mxu0 %v426
    %551 = vmatpush.bf16.msra.mxu0 %v425
    %552 = vmatpush.bf16.msra.mxu0 %v424
    %553 = vmatmul.bf16.gmra.mxu0 %v185
    %v554 = vpop.f32.mrf.mxu0
    %v555 = vadd.f32 %v542, %v554
    %v556 = vpop.f32.mrf.mxu0
    %557 = vdwg.mxu0
    %s558 = sld [smem:[#allocation2]]
    %v559 = vstv %s558
    %v560 = vmul.f32 %v559, 1.442695
    %v561 = vpow.pop %v560
    %s562 = vtos %v561
    %s563 = smul.f32 %s562, 0.5
    %v564 = vmul.f32 %v555, %v555
    %vm565 = vcmask 517120
    %v566 = vsel %vm565, %v564, 0.0
    %567 = vadd.xlane.f32.xlu0 %v566
    %v568 = vpop.xlane.xlu0 %567
    %v569 = vadd.f32 %v568, 1e-12
    %v570 = vrsqrt.pop %v569
    %v571 = vmul.f32 %v570, %v569
    %v572 = vmul.f32 %v571, %v570
    %v573 = vmul.f32 0.5, %v572
    %v574 = vsub.f32 1.5, %v573
    %v575 = vmul.f32 %v570, %v574
    %vm576 = vweird.f32 %v569
    %vm577 = vweird.f32 %v570
    %vm578 = vmor %vm576, %vm577
    %v579 = vsel %vm578, %v570, %v575
    %v580 = vstv %s563
    %v581 = vmul.f32 %v579, %v580
    %v582 = vmul.f32 %v555, %v581
    %v583 = vld [vmem:[%s3] sm:$0x1]
    %v584 = vld [vmem:[%s4] sm:$0xff]
    %v585 = vld [vmem:[%s4 + $0x8] sm:$0xff]
    %v586 = vld [vmem:[%s5] sm:$0x1]
    %vm587 = vcmask 130048
    %v589 = vsel %vm587, %v583, 0
    %591 = vmatpush.msra.mxu0 0.0
    %592 = vmatpush.msra.mxu0 0.0
    %593 = vmatpush.msra.mxu0 0.0
    %594 = vmatpush.msra.mxu0 0.0
    %595 = vmatpush.msra.mxu0 0.0
    %596 = vmatpush.msra.mxu0 0.0
    %597 = vmatpush.msra.mxu0 0.0
    %598 = vmatpush.msra.mxu0 0.0
    %599 = vmatpush.msra.mxu0 0.0
    %600 = vmatpush.msra.mxu0 0.0
    %601 = vmatpush.msra.mxu0 0.0
    %602 = vmatpush.msra.mxu0 0.0
    %603 = vmatpush.msra.mxu0 0.0
    %604 = vmatpush.msra.mxu0 0.0
    %605 = vmatpush.msra.mxu0 %v585
    %606 = vmatpush.msra.mxu0 %v584
    %607 = vmatmul.f32.gmra.mxu0 %v589
    %v608 = vpop.f32.mrf.mxu0
    %v609 = vadd.f32 %v586, %v608
    %610 = vdwg.mxu0
    %v611 = vmax.f32 %v609, 0.0
    %v612 = vld [vmem:[%s6] sm:$0xff]
    %v613 = vld [vmem:[%s6 + $0x8] sm:$0xff]
    %v614 = vld [vmem:[%s6 + $0x10] sm:$0xff]
    %v615 = vld [vmem:[%s6 + $0x18] sm:$0xff]
    %vm616 = vcmask 261120
    %v618 = vsel %vm616, %v611, 0
    %620 = vmatpush.msra.mxu0 0.0
    %621 = vmatpush.msra.mxu0 0.0
    %622 = vmatpush.msra.mxu0 0.0
    %623 = vmatpush.msra.mxu0 0.0
    %624 = vmatpush.msra.mxu0 0.0
    %625 = vmatpush.msra.mxu0 0.0
    %626 = vmatpush.msra.mxu0 0.0
    %627 = vmatpush.msra.mxu0 0.0
    %628 = vmatpush.msra.mxu0 0.0
    %629 = vmatpush.msra.mxu0 0.0
    %630 = vmatpush.msra.mxu0 0.0
    %631 = vmatpush.msra.mxu0 0.0
    %632 = vmatpush.msra.mxu0 %v615
    %633 = vmatpush.msra.mxu0 %v614
    %634 = vmatpush.msra.mxu0 %v613
    %635 = vmatpush.msra.mxu0 %v612
    %636 = vmatmul.f32.gmra.mxu0 %v618
    %v637 = vpop.f32.mrf.mxu0
    %v638 = vadd.f32 0.0, %v637
    %639 = vdwg.mxu0
    %v640 = vld [vmem:[%s7] sm:$0xff]
    %v641 = vld [vmem:[%s7 + $0x8] sm:$0xff]
    %v642 = vld [vmem:[%s7 + $0x10] sm:$0xff]
    %v643 = vld [vmem:[%s7 + $0x18] sm:$0xff]
    %v644 = vld [vmem:[%s7 + $0x20] sm:$0xff]
    %v645 = vld [vmem:[%s7 + $0x28] sm:$0xff]
    %v646 = vld [vmem:[%s7 + $0x30] sm:$0xff]
    %v647 = vld [vmem:[%s7 + $0x38] sm:$0xff]
    %v648 = vperm.slane %v638, 0
    %v649 = vmul.f32 %v640, %v648
    %v650 = vmul.f32 %v641, %v648
    %v651 = vmul.f32 %v642, %v648
    %v652 = vmul.f32 %v643, %v648
    %v653 = vmul.f32 %v644, %v648
    %v654 = vmul.f32 %v645, %v648
    %v655 = vmul.f32 %v646, %v648
    %v656 = vmul.f32 %v647, %v648
    %v657 = vld [vmem:[%s8] sm:$0xff]
    %v658 = vld [vmem:[%s8 + $0x8] sm:$0xff]
    %v659 = vld [vmem:[%s8 + $0x10] sm:$0xff]
    %v660 = vld [vmem:[%s8 + $0x18] sm:$0xff]
    %v661 = vld [vmem:[%s8 + $0x20] sm:$0xff]
    %v662 = vld [vmem:[%s8 + $0x28] sm:$0xff]
    %v663 = vld [vmem:[%s8 + $0x30] sm:$0xff]
    %v664 = vld [vmem:[%s8 + $0x38] sm:$0xff]
    %v665 = vld [vmem:[%s8 + $0x40] sm:$0xff]
    %v666 = vld [vmem:[%s8 + $0x48] sm:$0xff]
    %v667 = vld [vmem:[%s8 + $0x50] sm:$0xff]
    %v668 = vld [vmem:[%s8 + $0x58] sm:$0xff]
    %v669 = vld [vmem:[%s8 + $0x60] sm:$0xff]
    %v670 = vld [vmem:[%s8 + $0x68] sm:$0xff]
    %v671 = vld [vmem:[%s8 + $0x70] sm:$0xff]
    %v672 = vld [vmem:[%s8 + $0x78] sm:$0xff]
    %v673 = vld [vmem:[%s10] sm:$0xff]
    %v674 = vld [vmem:[%s10 + $0x8] sm:$0xff]
    %v675 = vld [vmem:[%s10 + $0x10] sm:$0xff]
    %v676 = vld [vmem:[%s10 + $0x18] sm:$0xff]
    %v677 = vld [vmem:[%s10 + $0x20] sm:$0xff]
    %v678 = vld [vmem:[%s10 + $0x28] sm:$0xff]
    %v679 = vld [vmem:[%s10 + $0x30] sm:$0xff]
    %v680 = vld [vmem:[%s10 + $0x38] sm:$0xff]
    %681 = vmatpush.msra.mxu0 %v672
    %682 = vmatpush.msra.mxu0 %v671
    %683 = vmatpush.msra.mxu0 %v670
    %684 = vmatpush.msra.mxu0 %v669
    %685 = vmatpush.msra.mxu0 %v668
    %686 = vmatpush.msra.mxu0 %v667
    %687 = vmatpush.msra.mxu0 %v666
    %688 = vmatpush.msra.mxu0 %v665
    %689 = vmatpush.msra.mxu0 %v664
    %690 = vmatpush.msra.mxu0 %v663
    %691 = vmatpush.msra.mxu0 %v662
    %692 = vmatpush.msra.mxu0 %v661
    %693 = vmatpush.msra.mxu0 %v660
    %694 = vmatpush.msra.mxu0 %v659
    %695 = vmatpush.msra.mxu0 %v658
    %696 = vmatpush.msra.mxu0 %v657
    %697 = vmatmul.f32.gmra.mxu0 %v649
    %v698 = vpop.f32.mrf.mxu0
    %v699 = vadd.f32 %v673, %v698
    %700 = vmatmul.f32.gmra.mxu0 %v650
    %v701 = vpop.f32.mrf.mxu0
    %v702 = vadd.f32 %v674, %v701
    %703 = vmatmul.f32.gmra.mxu0 %v651
    %v704 = vpop.f32.mrf.mxu0
    %v705 = vadd.f32 %v675, %v704
    %706 = vmatmul.f32.gmra.mxu0 %v652
    %v707 = vpop.f32.mrf.mxu0
    %v708 = vadd.f32 %v676, %v707
    %709 = vmatmul.f32.gmra.mxu0 %v653
    %v710 = vpop.f32.mrf.mxu0
    %v711 = vadd.f32 %v677, %v710
    %712 = vmatmul.f32.gmra.mxu0 %v654
    %v713 = vpop.f32.mrf.mxu0
    %v714 = vadd.f32 %v678, %v713
    %715 = vmatmul.f32.gmra.mxu0 %v655
    %v716 = vpop.f32.mrf.mxu0
    %v717 = vadd.f32 %v679, %v716
    %718 = vmatmul.f32.gmra.mxu0 %v656
    %v719 = vpop.f32.mrf.mxu0
    %v720 = vadd.f32 %v680, %v719
    %721 = vdwg.mxu0
    %v722 = vld [vmem:[%s9] sm:$0xff]
    %v723 = vld [vmem:[%s9 + $0x8] sm:$0xff]
    %v724 = vld [vmem:[%s9 + $0x10] sm:$0xff]
    %v725 = vld [vmem:[%s9 + $0x18] sm:$0xff]
    %v726 = vld [vmem:[%s9 + $0x20] sm:$0xff]
    %v727 = vld [vmem:[%s9 + $0x28] sm:$0xff]
    %v728 = vld [vmem:[%s9 + $0x30] sm:$0xff]
    %v729 = vld [vmem:[%s9 + $0x38] sm:$0xff]
    %v730 = vld [vmem:[%s9 + $0x40] sm:$0xff]
    %v731 = vld [vmem:[%s9 + $0x48] sm:$0xff]
    %v732 = vld [vmem:[%s9 + $0x50] sm:$0xff]
    %v733 = vld [vmem:[%s9 + $0x58] sm:$0xff]
    %v734 = vld [vmem:[%s9 + $0x60] sm:$0xff]
    %v735 = vld [vmem:[%s9 + $0x68] sm:$0xff]
    %v736 = vld [vmem:[%s9 + $0x70] sm:$0xff]
    %v737 = vld [vmem:[%s9 + $0x78] sm:$0xff]
    %v738 = vld [vmem:[%s11] sm:$0xff]
    %v739 = vld [vmem:[%s11 + $0x8] sm:$0xff]
    %v740 = vld [vmem:[%s11 + $0x10] sm:$0xff]
    %v741 = vld [vmem:[%s11 + $0x18] sm:$0xff]
    %v742 = vld [vmem:[%s11 + $0x20] sm:$0xff]
    %v743 = vld [vmem:[%s11 + $0x28] sm:$0xff]
    %v744 = vld [vmem:[%s11 + $0x30] sm:$0xff]
    %v745 = vld [vmem:[%s11 + $0x38] sm:$0xff]
    %746 = vmatpush.msra.mxu0 %v737
    %747 = vmatpush.msra.mxu0 %v736
    %748 = vmatpush.msra.mxu0 %v735
    %749 = vmatpush.msra.mxu0 %v734
    %750 = vmatpush.msra.mxu0 %v733
    %751 = vmatpush.msra.mxu0 %v732
    %752 = vmatpush.msra.mxu0 %v731
    %753 = vmatpush.msra.mxu0 %v730
    %754 = vmatpush.msra.mxu0 %v729
    %755 = vmatpush.msra.mxu0 %v728
    %756 = vmatpush.msra.mxu0 %v727
    %757 = vmatpush.msra.mxu0 %v726
    %758 = vmatpush.msra.mxu0 %v725
    %759 = vmatpush.msra.mxu0 %v724
    %760 = vmatpush.msra.mxu0 %v723
    %761 = vmatpush.msra.mxu0 %v722
    %762 = vmatmul.f32.gmra.mxu0 %v649
    %v763 = vpop.f32.mrf.mxu0
    %v764 = vadd.f32 %v738, %v763
    %765 = vmatmul.f32.gmra.mxu0 %v650
    %v766 = vpop.f32.mrf.mxu0
    %v767 = vadd.f32 %v739, %v766
    %768 = vmatmul.f32.gmra.mxu0 %v651
    %v769 = vpop.f32.mrf.mxu0
    %v770 = vadd.f32 %v740, %v769
    %771 = vmatmul.f32.gmra.mxu0 %v652
    %v772 = vpop.f32.mrf.mxu0
    %v773 = vadd.f32 %v741, %v772
    %774 = vmatmul.f32.gmra.mxu0 %v653
    %v775 = vpop.f32.mrf.mxu0
    %v776 = vadd.f32 %v742, %v775
    %777 = vmatmul.f32.gmra.mxu0 %v654
    %v778 = vpop.f32.mrf.mxu0
    %v779 = vadd.f32 %v743, %v778
    %780 = vmatmul.f32.gmra.mxu0 %v655
    %v781 = vpop.f32.mrf.mxu0
    %v782 = vadd.f32 %v744, %v781
    %783 = vmatmul.f32.gmra.mxu0 %v656
    %v784 = vpop.f32.mrf.mxu0
    %v785 = vadd.f32 %v745, %v784
    %786 = vdwg.mxu0
    %v787 = vmul.f32 %v764, 0.5
    %v788 = vmul.f32 %v767, 0.5
    %v789 = vmul.f32 %v770, 0.5
    %v790 = vmul.f32 %v773, 0.5
    %v791 = vmul.f32 %v776, 0.5
    %v792 = vmul.f32 %v779, 0.5
    %v793 = vmul.f32 %v782, 0.5
    %v794 = vmul.f32 %v785, 0.5
    %v795 = vmul.f32 %v787, 1.442695
    %v796 = vpow.pop %v795
    %v797 = vmul.f32 %v788, 1.442695
    %v798 = vpow.pop %v797
    %v799 = vmul.f32 %v789, 1.442695
    %v800 = vpow.pop %v799
    %v801 = vmul.f32 %v790, 1.442695
    %v802 = vpow.pop %v801
    %v803 = vmul.f32 %v791, 1.442695
    %v804 = vpow.pop %v803
    %v805 = vmul.f32 %v792, 1.442695
    %v806 = vpow.pop %v805
    %v807 = vmul.f32 %v793, 1.442695
    %v808 = vpow.pop %v807
    %v809 = vmul.f32 %v794, 1.442695
    %v810 = vpow.pop %v809
    %v811 = vadd.f32 %v764, 1.0
    %v812 = vadd.f32 %v767, 1.0
    %v813 = vadd.f32 %v770, 1.0
    %v814 = vadd.f32 %v773, 1.0
    %v815 = vadd.f32 %v776, 1.0
    %v816 = vadd.f32 %v779, 1.0
    %v817 = vadd.f32 %v782, 1.0
    %v818 = vadd.f32 %v785, 1.0
    %v819 = vmul.f32 %v699, %v699
    %v820 = vmul.f32 %v702, %v702
    %v821 = vmul.f32 %v705, %v705
    %v822 = vmul.f32 %v708, %v708
    %v823 = vmul.f32 %v711, %v711
    %v824 = vmul.f32 %v714, %v714
    %v825 = vmul.f32 %v717, %v717
    %v826 = vmul.f32 %v720, %v720
    %v827 = vsub.f32 %v811, %v819
    %v828 = vsub.f32 %v812, %v820
    %v829 = vsub.f32 %v813, %v821
    %v830 = vsub.f32 %v814, %v822
    %v831 = vsub.f32 %v815, %v823
    %v832 = vsub.f32 %v816, %v824
    %v833 = vsub.f32 %v817, %v825
    %v834 = vsub.f32 %v818, %v826
    %v835 = vmul.f32 %v796, %v796
    %v836 = vmul.f32 %v798, %v798
    %v837 = vmul.f32 %v800, %v800
    %v838 = vmul.f32 %v802, %v802
    %v839 = vmul.f32 %v804, %v804
    %v840 = vmul.f32 %v806, %v806
    %v841 = vmul.f32 %v808, %v808
    %v842 = vmul.f32 %v810, %v810
    %v843 = vsub.f32 %v827, %v835
    %v844 = vsub.f32 %v828, %v836
    %v845 = vsub.f32 %v829, %v837
    %v846 = vsub.f32 %v830, %v838
    %v847 = vsub.f32 %v831, %v839
    %v848 = vsub.f32 %v832, %v840
    %v849 = vsub.f32 %v833, %v841
    %v850 = vsub.f32 %v834, %v842
    %v851 = vsel %vm616, %v843, 0.0
    %v852 = vsel %vm616, %v844, 0.0
    %v853 = vadd.f32 %v851, %v852
    %v854 = vsel %vm616, %v845, 0.0
    %v855 = vadd.f32 %v853, %v854
    %v856 = vsel %vm616, %v846, 0.0
    %v857 = vadd.f32 %v855, %v856
    %v858 = vsel %vm616, %v847, 0.0
    %v859 = vadd.f32 %v857, %v858
    %v860 = vsel %vm616, %v848, 0.0
    %v861 = vadd.f32 %v859, %v860
    %v862 = vsel %vm616, %v849, 0.0
    %v863 = vadd.f32 %v861, %v862
    %v864 = vsel %vm616, %v850, 0.0
    %v865 = vadd.f32 %v863, %v864
    %866 = vadd.xlane.f32.xlu0 %v865
    %v867 = vpop.xlane.xlu0 %866
    %v868 = vrot.slane %v867, 4
    %v869 = vadd.f32 %v867, %v868
    %v870 = vrot.slane %v869, 2
    %v871 = vadd.f32 %v869, %v870
    %v872 = vrot.slane %v871, 1
    %v873 = vadd.f32 %v871, %v872
    %s874 = vtos %v873
    %s875 = smul.f32 %s874, -0.0625
    %s876 = scalar_lea.smem [#allocation6], 0
    %877 = sst [smem:[%s876]] %s875
    %v878 = vld [vmem:[%s12] sm:$0xff]
    %v879 = vld [vmem:[%s12 + $0x8] sm:$0xff]
    %v880 = vld [vmem:[%s12 + $0x10] sm:$0xff]
    %v881 = vld [vmem:[%s12 + $0x18] sm:$0xff]
    %v882 = vld [vmem:[%s12 + $0x20] sm:$0xff]
    %v883 = vld [vmem:[%s12 + $0x28] sm:$0xff]
    %v884 = vld [vmem:[%s12 + $0x30] sm:$0xff]
    %v885 = vld [vmem:[%s12 + $0x38] sm:$0xff]
    %v886 = vld [vmem:[%s13] sm:$0xff]
    %888 = vst [vmem:[#allocation1] ss:$2 sm:$0xff] %v886
    %v889 = vld.sshfl [vmem:[#allocation1] sm:$0xff pattern:$0x75316420]
    %v890 = vld.sshfl [vmem:[#allocation1 + $0x8] sm:$0xff pattern:$0x75316420]
    %vm891 = vcmask 31744
    %v893 = vsel %vm891, %v878, 0
    %v896 = vsel %vm891, %v879, 0
    %v899 = vsel %vm891, %v880, 0
    %v902 = vsel %vm891, %v881, 0
    %v905 = vsel %vm891, %v882, 0
    %v908 = vsel %vm891, %v883, 0
    %v911 = vsel %vm891, %v884, 0
    %v914 = vsel %vm891, %v885, 0
    %vm916 = vcmask 1043456
    %v917 = vsel %vm916, %v889, 0
    %v919 = vsel %vm916, %v890, 0
    %921 = vmatpush.msra.mxu0 0.0
    %922 = vmatpush.msra.mxu0 0.0
    %923 = vmatpush.msra.mxu0 0.0
    %924 = vmatpush.msra.mxu0 0.0
    %925 = vmatpush.msra.mxu0 0.0
    %926 = vmatpush.msra.mxu0 0.0
    %927 = vmatpush.msra.mxu0 0.0
    %928 = vmatpush.msra.mxu0 0.0
    %929 = vmatpush.msra.mxu0 0.0
    %930 = vmatpush.msra.mxu0 0.0
    %931 = vmatpush.msra.mxu0 0.0
    %932 = vmatpush.msra.mxu0 0.0
    %933 = vmatpush.msra.mxu0 0.0
    %934 = vmatpush.msra.mxu0 0.0
    %935 = vmatpush.msra.mxu0 0.0
    %936 = vmatpush.msra.mxu0 %v917
    %937 = vmatmul.f32.gmra.mxu0 %v893
    %v938 = vpop.f32.mrf.mxu0
    %v939 = vadd.f32 0.0, %v938
    %940 = vmatmul.f32.gmra.mxu0 %v896
    %v941 = vpop.f32.mrf.mxu0
    %v942 = vadd.f32 0.0, %v941
    %943 = vmatmul.f32.gmra.mxu0 %v899
    %v944 = vpop.f32.mrf.mxu0
    %v945 = vadd.f32 0.0, %v944
    %946 = vmatmul.f32.gmra.mxu0 %v902
    %v947 = vpop.f32.mrf.mxu0
    %v948 = vadd.f32 0.0, %v947
    %949 = vmatmul.f32.gmra.mxu0 %v905
    %v950 = vpop.f32.mrf.mxu0
    %v951 = vadd.f32 0.0, %v950
    %952 = vmatmul.f32.gmra.mxu0 %v908
    %v953 = vpop.f32.mrf.mxu0
    %v954 = vadd.f32 0.0, %v953
    %955 = vmatmul.f32.gmra.mxu0 %v911
    %v956 = vpop.f32.mrf.mxu0
    %v957 = vadd.f32 0.0, %v956
    %958 = vmatmul.f32.gmra.mxu0 %v914
    %v959 = vpop.f32.mrf.mxu0
    %v960 = vadd.f32 0.0, %v959
    %961 = vdwg.mxu0
    %962 = vmatpush.msra.mxu0 0.0
    %963 = vmatpush.msra.mxu0 0.0
    %964 = vmatpush.msra.mxu0 0.0
    %965 = vmatpush.msra.mxu0 0.0
    %966 = vmatpush.msra.mxu0 0.0
    %967 = vmatpush.msra.mxu0 0.0
    %968 = vmatpush.msra.mxu0 0.0
    %969 = vmatpush.msra.mxu0 0.0
    %970 = vmatpush.msra.mxu0 0.0
    %971 = vmatpush.msra.mxu0 0.0
    %972 = vmatpush.msra.mxu0 0.0
    %973 = vmatpush.msra.mxu0 0.0
    %974 = vmatpush.msra.mxu0 0.0
    %975 = vmatpush.msra.mxu0 0.0
    %976 = vmatpush.msra.mxu0 0.0
    %977 = vmatpush.msra.mxu0 %v919
    %978 = vmatmul.f32.gmra.mxu0 %v893
    %v979 = vpop.f32.mrf.mxu0
    %v980 = vadd.f32 0.0, %v979
    %981 = vmatmul.f32.gmra.mxu0 %v896
    %v982 = vpop.f32.mrf.mxu0
    %v983 = vadd.f32 0.0, %v982
    %984 = vmatmul.f32.gmra.mxu0 %v899
    %v985 = vpop.f32.mrf.mxu0
    %v986 = vadd.f32 0.0, %v985
    %987 = vmatmul.f32.gmra.mxu0 %v902
    %v988 = vpop.f32.mrf.mxu0
    %v989 = vadd.f32 0.0, %v988
    %990 = vmatmul.f32.gmra.mxu0 %v905
    %v991 = vpop.f32.mrf.mxu0
    %v992 = vadd.f32 0.0, %v991
    %993 = vmatmul.f32.gmra.mxu0 %v908
    %v994 = vpop.f32.mrf.mxu0
    %v995 = vadd.f32 0.0, %v994
    %996 = vmatmul.f32.gmra.mxu0 %v911
    %v997 = vpop.f32.mrf.mxu0
    %v998 = vadd.f32 0.0, %v997
    %999 = vmatmul.f32.gmra.mxu0 %v914
    %v1000 = vpop.f32.mrf.mxu0
    %v1001 = vadd.f32 0.0, %v1000
    %1002 = vdwg.mxu0
    %v1003 = vld [vmem:[%s14] sm:$0xff]
    %v1004 = vld [vmem:[%s14 + $0x8] sm:$0xff]
    %v1005 = vld [vmem:[%s14 + $0x10] sm:$0xff]
    %v1006 = vld [vmem:[%s14 + $0x18] sm:$0xff]
    %v1007 = vld [vmem:[%s14 + $0x20] sm:$0xff]
    %v1008 = vld [vmem:[%s14 + $0x28] sm:$0xff]
    %v1009 = vld [vmem:[%s14 + $0x30] sm:$0xff]
    %v1010 = vld [vmem:[%s14 + $0x38] sm:$0xff]
    %v1011 = vld [vmem:[%s15] sm:$0xf]
    %v1012 = vld [vmem:[%s15 + $0x4] sm:$0xf]
    %v1013 = vld [vmem:[%s15 + $0x8] sm:$0xf]
    %v1014 = vld [vmem:[%s15 + $0xc] sm:$0xf]
    %v1015 = vld [vmem:[%s16] sm:$0x1]
    %v1016 = vld [vmem:[%s17] sm:$0x1]
    %v1017 = vld [vmem:[%s18] sm:$0x1]
    %v1018 = vld [vmem:[%s19] sm:$0xff]
    %v1019 = vld [vmem:[%s19 + $0x8] sm:$0xff]
    %v1020 = vld [vmem:[%s19 + $0x10] sm:$0xff]
    %v1021 = vld [vmem:[%s19 + $0x18] sm:$0xff]
    %v1022 = vld [vmem:[%s19 + $0x20] sm:$0xff]
    %v1023 = vld [vmem:[%s19 + $0x28] sm:$0xff]
    %v1024 = vld [vmem:[%s19 + $0x30] sm:$0xff]
    %v1025 = vld [vmem:[%s19 + $0x38] sm:$0xff]
    %v1026 = vld [vmem:[%s19 + $0x40] sm:$0xff]
    %v1027 = vld [vmem:[%s19 + $0x48] sm:$0xff]
    %v1028 = vld [vmem:[%s19 + $0x50] sm:$0xff]
    %v1029 = vld [vmem:[%s19 + $0x58] sm:$0xff]
    %v1030 = vld [vmem:[%s19 + $0x60] sm:$0xff]
    %v1031 = vld [vmem:[%s19 + $0x68] sm:$0xff]
    %v1032 = vld [vmem:[%s19 + $0x70] sm:$0xff]
    %v1033 = vld [vmem:[%s19 + $0x78] sm:$0xff]
    %v1034 = vld [vmem:[%s20] sm:$0xf]
    %v1035 = vld [vmem:[%s20 + $0x4] sm:$0xf]
    %v1036 = vld [vmem:[%s20 + $0x8] sm:$0xf]
    %v1037 = vld [vmem:[%s20 + $0xc] sm:$0xf]
    %v1038 = vmul.f32 %v939, %v796
    %v1039 = vmul.f32 %v942, %v798
    %v1040 = vmul.f32 %v945, %v800
    %v1041 = vmul.f32 %v948, %v802
    %v1042 = vmul.f32 %v951, %v804
    %v1043 = vmul.f32 %v954, %v806
    %v1044 = vmul.f32 %v957, %v808
    %v1045 = vmul.f32 %v960, %v810
    %v1046 = vadd.f32 %v699, %v1038
    %v1047 = vadd.f32 %v702, %v1039
    %v1048 = vadd.f32 %v705, %v1040
    %v1049 = vadd.f32 %v708, %v1041
    %v1050 = vadd.f32 %v711, %v1042
    %v1051 = vadd.f32 %v714, %v1043
    %v1052 = vadd.f32 %v717, %v1044
    %v1053 = vadd.f32 %v720, %v1045
    %v1054 = vadd.f32 %v1003, %v1046
    %v1055 = vadd.f32 %v1004, %v1047
    %v1056 = vadd.f32 %v1005, %v1048
    %v1057 = vadd.f32 %v1006, %v1049
    %v1058 = vadd.f32 %v1007, %v1050
    %v1059 = vadd.f32 %v1008, %v1051
    %v1060 = vadd.f32 %v1009, %v1052
    %v1061 = vadd.f32 %v1010, %v1053
    %v1062 = vpack.c.bf16 %v1055, %v1054
    %v1063 = vpack.c.bf16 %v1057, %v1056
    %v1064 = vpack.c.bf16 %v1059, %v1058
    %v1065 = vpack.c.bf16 %v1061, %v1060
    %v1067 = vperm.slane %v1015, 0
    %v1073 = vunpack.c.l.b16 %v1011
    %v1074 = vunpack.c.l.b16 %v1012
    %v1075 = vunpack.c.l.b16 %v1013
    %v1076 = vunpack.c.l.b16 %v1014
    %v1077 = vpack.c.b16 %v1074, %v1073
    %v1078 = vpack.c.b16 %v1076, %v1075
    %v1082 = vsel %vm616, %v1062, 0
    %v1085 = vsel %vm616, %v1063, 0
    %v1088 = vsel %vm616, %v1064, 0
    %v1091 = vsel %vm616, %v1065, 0
    %1093 = vmatpush.bf16.msra.mxu0 0
    %1094 = vmatpush.bf16.msra.mxu0 0
    %1095 = vmatpush.bf16.msra.mxu0 0
    %1096 = vmatpush.bf16.msra.mxu0 0
    %1097 = vmatpush.bf16.msra.mxu0 0
    %1098 = vmatpush.bf16.msra.mxu0 0
    %1099 = vmatpush.bf16.msra.mxu0 %v1078
    %1100 = vmatpush.bf16.msra.mxu0 %v1077
    %1101 = vmatmul.bf16.gmra.mxu0 %v1082
    %v1102 = vpop.f32.mrf.mxu0
    %v1103 = vadd.f32 %v1067, %v1102
    %v1104 = vpop.f32.mrf.mxu0
    %v1105 = vadd.f32 %v1067, %v1104
    %1106 = vmatmul.bf16.gmra.mxu0 %v1085
    %v1107 = vpop.f32.mrf.mxu0
    %v1108 = vadd.f32 %v1067, %v1107
    %v1109 = vpop.f32.mrf.mxu0
    %v1110 = vadd.f32 %v1067, %v1109
    %1111 = vmatmul.bf16.gmra.mxu0 %v1088
    %v1112 = vpop.f32.mrf.mxu0
    %v1113 = vadd.f32 %v1067, %v1112
    %v1114 = vpop.f32.mrf.mxu0
    %v1115 = vadd.f32 %v1067, %v1114
    %1116 = vmatmul.bf16.gmra.mxu0 %v1091
    %v1117 = vpop.f32.mrf.mxu0
    %v1118 = vadd.f32 %v1067, %v1117
    %v1119 = vpop.f32.mrf.mxu0
    %v1120 = vadd.f32 %v1067, %v1119
    %1121 = vdwg.mxu0
    %v1122 = vmul.f32 %v1103, %v1103
    %v1123 = vmul.f32 %v1105, %v1105
    %v1124 = vmul.f32 %v1108, %v1108
    %v1125 = vmul.f32 %v1110, %v1110
    %v1126 = vmul.f32 %v1113, %v1113
    %v1127 = vmul.f32 %v1115, %v1115
    %v1128 = vmul.f32 %v1118, %v1118
    %v1129 = vmul.f32 %v1120, %v1120
    %v1130 = vmul.f32 %v1103, %v1122
    %v1131 = vmul.f32 %v1105, %v1123
    %v1132 = vmul.f32 %v1108, %v1124
    %v1133 = vmul.f32 %v1110, %v1125
    %v1134 = vmul.f32 %v1113, %v1126
    %v1135 = vmul.f32 %v1115, %v1127
    %v1136 = vmul.f32 %v1118, %v1128
    %v1137 = vmul.f32 %v1120, %v1129
    %v1138 = vmul.f32 %v1130, 0.044715
    %v1139 = vmul.f32 %v1131, 0.044715
    %v1140 = vmul.f32 %v1132, 0.044715
    %v1141 = vmul.f32 %v1133, 0.044715
    %v1142 = vmul.f32 %v1134, 0.044715
    %v1143 = vmul.f32 %v1135, 0.044715
    %v1144 = vmul.f32 %v1136, 0.044715
    %v1145 = vmul.f32 %v1137, 0.044715
    %v1146 = vadd.f32 %v1103, %v1138
    %v1147 = vadd.f32 %v1105, %v1139
    %v1148 = vadd.f32 %v1108, %v1140
    %v1149 = vadd.f32 %v1110, %v1141
    %v1150 = vadd.f32 %v1113, %v1142
    %v1151 = vadd.f32 %v1115, %v1143
    %v1152 = vadd.f32 %v1118, %v1144
    %v1153 = vadd.f32 %v1120, %v1145
    %v1154 = vmul.f32 %v1146, 0.7978846
    %v1155 = vmul.f32 %v1147, 0.7978846
    %v1156 = vmul.f32 %v1148, 0.7978846
    %v1157 = vmul.f32 %v1149, 0.7978846
    %v1158 = vmul.f32 %v1150, 0.7978846
    %v1159 = vmul.f32 %v1151, 0.7978846
    %v1160 = vmul.f32 %v1152, 0.7978846
    %v1161 = vmul.f32 %v1153, 0.7978846
    %v1162 = vtanh.pop %v1154
    %v1163 = vtanh.pop %v1155
    %v1164 = vtanh.pop %v1156
    %v1165 = vtanh.pop %v1157
    %v1166 = vtanh.pop %v1158
    %v1167 = vtanh.pop %v1159
    %v1168 = vtanh.pop %v1160
    %v1169 = vtanh.pop %v1161
    %v1170 = vadd.f32 %v1162, 1.0
    %v1171 = vadd.f32 %v1163, 1.0
    %v1172 = vadd.f32 %v1164, 1.0
    %v1173 = vadd.f32 %v1165, 1.0
    %v1174 = vadd.f32 %v1166, 1.0
    %v1175 = vadd.f32 %v1167, 1.0
    %v1176 = vadd.f32 %v1168, 1.0
    %v1177 = vadd.f32 %v1169, 1.0
    %v1178 = vmul.f32 %v1170, 0.5
    %v1179 = vmul.f32 %v1171, 0.5
    %v1180 = vmul.f32 %v1172, 0.5
    %v1181 = vmul.f32 %v1173, 0.5
    %v1182 = vmul.f32 %v1174, 0.5
    %v1183 = vmul.f32 %v1175, 0.5
    %v1184 = vmul.f32 %v1176, 0.5
    %v1185 = vmul.f32 %v1177, 0.5
    %v1186 = vmul.f32 %v1103, %v1178
    %v1187 = vmul.f32 %v1105, %v1179
    %v1188 = vmul.f32 %v1108, %v1180
    %v1189 = vmul.f32 %v1110, %v1181
    %v1190 = vmul.f32 %v1113, %v1182
    %v1191 = vmul.f32 %v1115, %v1183
    %v1192 = vmul.f32 %v1118, %v1184
    %v1193 = vmul.f32 %v1120, %v1185
    %v1194 = vadd.f32 %v1054, %v1186
    %v1195 = vadd.f32 %v1055, %v1187
    %v1196 = vadd.f32 %v1056, %v1188
    %v1197 = vadd.f32 %v1057, %v1189
    %v1198 = vadd.f32 %v1058, %v1190
    %v1199 = vadd.f32 %v1059, %v1191
    %v1200 = vadd.f32 %v1060, %v1192
    %v1201 = vadd.f32 %v1061, %v1193
    %v1202 = vsel %vm616, %v1194, 0.0
    %1203 = vadd.xlane.f32.xlu0 %v1202
    %v1204 = vpop.xlane.xlu0 %1203
    %v1205 = vsel %vm616, %v1195, 0.0
    %1206 = vadd.xlane.f32.xlu0 %v1205
    %v1207 = vpop.xlane.xlu0 %1206
    %v1208 = vsel %vm616, %v1196, 0.0
    %1209 = vadd.xlane.f32.xlu0 %v1208
    %v1210 = vpop.xlane.xlu0 %1209
    %v1211 = vsel %vm616, %v1197, 0.0
    %1212 = vadd.xlane.f32.xlu0 %v1211
    %v1213 = vpop.xlane.xlu0 %1212
    %v1214 = vsel %vm616, %v1198, 0.0
    %1215 = vadd.xlane.f32.xlu0 %v1214
    %v1216 = vpop.xlane.xlu0 %1215
    %v1217 = vsel %vm616, %v1199, 0.0
    %1218 = vadd.xlane.f32.xlu0 %v1217
    %v1219 = vpop.xlane.xlu0 %1218
    %v1220 = vsel %vm616, %v1200, 0.0
    %1221 = vadd.xlane.f32.xlu0 %v1220
    %v1222 = vpop.xlane.xlu0 %1221
    %v1223 = vsel %vm616, %v1201, 0.0
    %1224 = vadd.xlane.f32.xlu0 %v1223
    %v1225 = vpop.xlane.xlu0 %1224
    %v1226 = vrcp.pop 32.0
    %v1227 = vmul.f32 32.0, %v1226
    %v1228 = vsub.f32 1.0, %v1227
    %v1229 = vmul.f32 %v1226, %v1228
    %v1230 = vadd.f32 %v1226, %v1229
    %vm1231 = vweird.f32 %v1226
    %v1232 = vsel %vm1231, %v1226, %v1230
    %v1233 = vmul.f32 %v1204, %v1232
    %v1234 = vmul.f32 %v1207, %v1232
    %v1235 = vmul.f32 %v1210, %v1232
    %v1236 = vmul.f32 %v1213, %v1232
    %v1237 = vmul.f32 %v1216, %v1232
    %v1238 = vmul.f32 %v1219, %v1232
    %v1239 = vmul.f32 %v1222, %v1232
    %v1240 = vmul.f32 %v1225, %v1232
    %v1241 = vsub.f32 %v1194, %v1233
    %v1242 = vsub.f32 %v1195, %v1234
    %v1243 = vsub.f32 %v1196, %v1235
    %v1244 = vsub.f32 %v1197, %v1236
    %v1245 = vsub.f32 %v1198, %v1237
    %v1246 = vsub.f32 %v1199, %v1238
    %v1247 = vsub.f32 %v1200, %v1239
    %v1248 = vsub.f32 %v1201, %v1240
    %v1249 = vmul.f32 %v1241, %v1241
    %v1250 = vmul.f32 %v1242, %v1242
    %v1251 = vmul.f32 %v1243, %v1243
    %v1252 = vmul.f32 %v1244, %v1244
    %v1253 = vmul.f32 %v1245, %v1245
    %v1254 = vmul.f32 %v1246, %v1246
    %v1255 = vmul.f32 %v1247, %v1247
    %v1256 = vmul.f32 %v1248, %v1248
    %v1257 = vsel %vm616, %v1249, 0.0
    %1258 = vadd.xlane.f32.xlu0 %v1257
    %v1259 = vpop.xlane.xlu0 %1258
    %v1260 = vsel %vm616, %v1250, 0.0
    %1261 = vadd.xlane.f32.xlu0 %v1260
    %v1262 = vpop.xlane.xlu0 %1261
    %v1263 = vsel %vm616, %v1251, 0.0
    %1264 = vadd.xlane.f32.xlu0 %v1263
    %v1265 = vpop.xlane.xlu0 %1264
    %v1266 = vsel %vm616, %v1252, 0.0
    %1267 = vadd.xlane.f32.xlu0 %v1266
    %v1268 = vpop.xlane.xlu0 %1267
    %v1269 = vsel %vm616, %v1253, 0.0
    %1270 = vadd.xlane.f32.xlu0 %v1269
    %v1271 = vpop.xlane.xlu0 %1270
    %v1272 = vsel %vm616, %v1254, 0.0
    %1273 = vadd.xlane.f32.xlu0 %v1272
    %v1274 = vpop.xlane.xlu0 %1273
    %v1275 = vsel %vm616, %v1255, 0.0
    %1276 = vadd.xlane.f32.xlu0 %v1275
    %v1277 = vpop.xlane.xlu0 %1276
    %v1278 = vsel %vm616, %v1256, 0.0
    %1279 = vadd.xlane.f32.xlu0 %v1278
    %v1280 = vpop.xlane.xlu0 %1279
    %v1281 = vmul.f32 %v1259, %v1232
    %v1282 = vmul.f32 %v1262, %v1232
    %v1283 = vmul.f32 %v1265, %v1232
    %v1284 = vmul.f32 %v1268, %v1232
    %v1285 = vmul.f32 %v1271, %v1232
    %v1286 = vmul.f32 %v1274, %v1232
    %v1287 = vmul.f32 %v1277, %v1232
    %v1288 = vmul.f32 %v1280, %v1232
    %v1289 = vadd.f32 %v1281, 1e-05
    %v1290 = vadd.f32 %v1282, 1e-05
    %v1291 = vadd.f32 %v1283, 1e-05
    %v1292 = vadd.f32 %v1284, 1e-05
    %v1293 = vadd.f32 %v1285, 1e-05
    %v1294 = vadd.f32 %v1286, 1e-05
    %v1295 = vadd.f32 %v1287, 1e-05
    %v1296 = vadd.f32 %v1288, 1e-05
    %v1297 = vrsqrt.pop %v1289
    %v1298 = vmul.f32 %v1297, %v1289
    %v1299 = vmul.f32 %v1298, %v1297
    %v1300 = vmul.f32 0.5, %v1299
    %v1301 = vsub.f32 1.5, %v1300
    %v1302 = vmul.f32 %v1297, %v1301
    %vm1303 = vweird.f32 %v1289
    %vm1304 = vweird.f32 %v1297
    %vm1305 = vmor %vm1303, %vm1304
    %v1306 = vsel %vm1305, %v1297, %v1302
    %v1307 = vrsqrt.pop %v1290
    %v1308 = vmul.f32 %v1307, %v1290
    %v1309 = vmul.f32 %v1308, %v1307
    %v1310 = vmul.f32 0.5, %v1309
    %v1311 = vsub.f32 1.5, %v1310
    %v1312 = vmul.f32 %v1307, %v1311
    %vm1313 = vweird.f32 %v1290
    %vm1314 = vweird.f32 %v1307
    %vm1315 = vmor %vm1313, %vm1314
    %v1316 = vsel %vm1315, %v1307, %v1312
    %v1317 = vrsqrt.pop %v1291
    %v1318 = vmul.f32 %v1317, %v1291
    %v1319 = vmul.f32 %v1318, %v1317
    %v1320 = vmul.f32 0.5, %v1319
    %v1321 = vsub.f32 1.5, %v1320
    %v1322 = vmul.f32 %v1317, %v1321
    %vm1323 = vweird.f32 %v1291
    %vm1324 = vweird.f32 %v1317
    %vm1325 = vmor %vm1323, %vm1324
    %v1326 = vsel %vm1325, %v1317, %v1322
    %v1327 = vrsqrt.pop %v1292
    %v1328 = vmul.f32 %v1327, %v1292
    %v1329 = vmul.f32 %v1328, %v1327
    %v1330 = vmul.f32 0.5, %v1329
    %v1331 = vsub.f32 1.5, %v1330
    %v1332 = vmul.f32 %v1327, %v1331
    %vm1333 = vweird.f32 %v1292
    %vm1334 = vweird.f32 %v1327
    %vm1335 = vmor %vm1333, %vm1334
    %v1336 = vsel %vm1335, %v1327, %v1332
    %v1337 = vrsqrt.pop %v1293
    %v1338 = vmul.f32 %v1337, %v1293
    %v1339 = vmul.f32 %v1338, %v1337
    %v1340 = vmul.f32 0.5, %v1339
    %v1341 = vsub.f32 1.5, %v1340
    %v1342 = vmul.f32 %v1337, %v1341
    %vm1343 = vweird.f32 %v1293
    %vm1344 = vweird.f32 %v1337
    %vm1345 = vmor %vm1343, %vm1344
    %v1346 = vsel %vm1345, %v1337, %v1342
    %v1347 = vrsqrt.pop %v1294
    %v1348 = vmul.f32 %v1347, %v1294
    %v1349 = vmul.f32 %v1348, %v1347
    %v1350 = vmul.f32 0.5, %v1349
    %v1351 = vsub.f32 1.5, %v1350
    %v1352 = vmul.f32 %v1347, %v1351
    %vm1353 = vweird.f32 %v1294
    %vm1354 = vweird.f32 %v1347
    %vm1355 = vmor %vm1353, %vm1354
    %v1356 = vsel %vm1355, %v1347, %v1352
    %v1357 = vrsqrt.pop %v1295
    %v1358 = vmul.f32 %v1357, %v1295
    %v1359 = vmul.f32 %v1358, %v1357
    %v1360 = vmul.f32 0.5, %v1359
    %v1361 = vsub.f32 1.5, %v1360
    %v1362 = vmul.f32 %v1357, %v1361
    %vm1363 = vweird.f32 %v1295
    %vm1364 = vweird.f32 %v1357
    %vm1365 = vmor %vm1363, %vm1364
    %v1366 = vsel %vm1365, %v1357, %v1362
    %v1367 = vrsqrt.pop %v1296
    %v1368 = vmul.f32 %v1367, %v1296
    %v1369 = vmul.f32 %v1368, %v1367
    %v1370 = vmul.f32 0.5, %v1369
    %v1371 = vsub.f32 1.5, %v1370
    %v1372 = vmul.f32 %v1367, %v1371
    %vm1373 = vweird.f32 %v1296
    %vm1374 = vweird.f32 %v1367
    %vm1375 = vmor %vm1373, %vm1374
    %v1376 = vsel %vm1375, %v1367, %v1372
    %v1377 = vmul.f32 %v1241, %v1306
    %v1378 = vmul.f32 %v1242, %v1316
    %v1379 = vmul.f32 %v1243, %v1326
    %v1380 = vmul.f32 %v1244, %v1336
    %v1381 = vmul.f32 %v1245, %v1346
    %v1382 = vmul.f32 %v1246, %v1356
    %v1383 = vmul.f32 %v1247, %v1366
    %v1384 = vmul.f32 %v1248, %v1376
    %v1386 = vperm.slane %v1016, 0
    %v1388 = vmul.f32 %v1377, %v1386
    %v1389 = vmul.f32 %v1378, %v1386
    %v1390 = vmul.f32 %v1379, %v1386
    %v1391 = vmul.f32 %v1380, %v1386
    %v1392 = vmul.f32 %v1381, %v1386
    %v1393 = vmul.f32 %v1382, %v1386
    %v1394 = vmul.f32 %v1383, %v1386
    %v1395 = vmul.f32 %v1384, %v1386
    %v1397 = vperm.slane %v1017, 0
    %v1399 = vadd.f32 %v1388, %v1397
    %v1400 = vadd.f32 %v1389, %v1397
    %v1401 = vadd.f32 %v1390, %v1397
    %v1402 = vadd.f32 %v1391, %v1397
    %v1403 = vadd.f32 %v1392, %v1397
    %v1404 = vadd.f32 %v1393, %v1397
    %v1405 = vadd.f32 %v1394, %v1397
    %v1406 = vadd.f32 %v1395, %v1397
    %vm1407 = vcmask 523264
    %v1409 = vsel %vm1407, %v1018, 0
    %v1412 = vsel %vm1407, %v1019, 0
    %v1415 = vsel %vm1407, %v1020, 0
    %v1418 = vsel %vm1407, %v1021, 0
    %v1421 = vsel %vm1407, %v1022, 0
    %v1424 = vsel %vm1407, %v1023, 0
    %v1427 = vsel %vm1407, %v1024, 0
    %v1430 = vsel %vm1407, %v1025, 0
    %v1433 = vsel %vm1407, %v1026, 0
    %v1436 = vsel %vm1407, %v1027, 0
    %v1439 = vsel %vm1407, %v1028, 0
    %v1442 = vsel %vm1407, %v1029, 0
    %v1445 = vsel %vm1407, %v1030, 0
    %v1448 = vsel %vm1407, %v1031, 0
    %v1451 = vsel %vm1407, %v1032, 0
    %v1454 = vsel %vm1407, %v1033, 0
    %1456 = vmatpush.msra.mxu0 0.0
    %1457 = vmatpush.msra.mxu0 0.0
    %1458 = vmatpush.msra.mxu0 0.0
    %1459 = vmatpush.msra.mxu0 0.0
    %1460 = vmatpush.msra.mxu0 0.0
    %1461 = vmatpush.msra.mxu0 0.0
    %1462 = vmatpush.msra.mxu0 0.0
    %1463 = vmatpush.msra.mxu0 0.0
    %1464 = vmatpush.msra.mxu0 %v1406
    %1465 = vmatpush.msra.mxu0 %v1405
    %1466 = vmatpush.msra.mxu0 %v1404
    %1467 = vmatpush.msra.mxu0 %v1403
    %1468 = vmatpush.msra.mxu0 %v1402
    %1469 = vmatpush.msra.mxu0 %v1401
    %1470 = vmatpush.msra.mxu0 %v1400
    %1471 = vmatpush.msra.mxu0 %v1399
    %1472 = vmatmul.f32.gmra.mxu0 %v1409
    %v1473 = vpop.f32.mrf.mxu0
    %v1474 = vadd.f32 0.0, %v1473
    %1475 = vmatmul.f32.gmra.mxu0 %v1412
    %v1476 = vpop.f32.mrf.mxu0
    %v1477 = vadd.f32 0.0, %v1476
    %1478 = vmatmul.f32.gmra.mxu0 %v1415
    %v1479 = vpop.f32.mrf.mxu0
    %v1480 = vadd.f32 0.0, %v1479
    %1481 = vmatmul.f32.gmra.mxu0 %v1418
    %v1482 = vpop.f32.mrf.mxu0
    %v1483 = vadd.f32 0.0, %v1482
    %1484 = vmatmul.f32.gmra.mxu0 %v1421
    %v1485 = vpop.f32.mrf.mxu0
    %v1486 = vadd.f32 0.0, %v1485
    %1487 = vmatmul.f32.gmra.mxu0 %v1424
    %v1488 = vpop.f32.mrf.mxu0
    %v1489 = vadd.f32 0.0, %v1488
    %1490 = vmatmul.f32.gmra.mxu0 %v1427
    %v1491 = vpop.f32.mrf.mxu0
    %v1492 = vadd.f32 0.0, %v1491
    %1493 = vmatmul.f32.gmra.mxu0 %v1430
    %v1494 = vpop.f32.mrf.mxu0
    %v1495 = vadd.f32 0.0, %v1494
    %1496 = vmatmul.f32.gmra.mxu0 %v1433
    %v1497 = vpop.f32.mrf.mxu0
    %v1498 = vadd.f32 0.0, %v1497
    %1499 = vmatmul.f32.gmra.mxu0 %v1436
    %v1500 = vpop.f32.mrf.mxu0
    %v1501 = vadd.f32 0.0, %v1500
    %1502 = vmatmul.f32.gmra.mxu0 %v1439
    %v1503 = vpop.f32.mrf.mxu0
    %v1504 = vadd.f32 0.0, %v1503
    %1505 = vmatmul.f32.gmra.mxu0 %v1442
    %v1506 = vpop.f32.mrf.mxu0
    %v1507 = vadd.f32 0.0, %v1506
    %1508 = vmatmul.f32.gmra.mxu0 %v1445
    %v1509 = vpop.f32.mrf.mxu0
    %v1510 = vadd.f32 0.0, %v1509
    %1511 = vmatmul.f32.gmra.mxu0 %v1448
    %v1512 = vpop.f32.mrf.mxu0
    %v1513 = vadd.f32 0.0, %v1512
    %1514 = vmatmul.f32.gmra.mxu0 %v1451
    %v1515 = vpop.f32.mrf.mxu0
    %v1516 = vadd.f32 0.0, %v1515
    %1517 = vmatmul.f32.gmra.mxu0 %v1454
    %v1518 = vpop.f32.mrf.mxu0
    %v1519 = vadd.f32 0.0, %v1518
    %1520 = vdwg.mxu0
    %v1521 = vpack.c.bf16 %v1477, %v1474
    %v1522 = vpack.c.bf16 %v1483, %v1480
    %v1523 = vpack.c.bf16 %v1489, %v1486
    %v1524 = vpack.c.bf16 %v1495, %v1492
    %v1525 = vpack.c.bf16 %v1501, %v1498
    %v1526 = vpack.c.bf16 %v1507, %v1504
    %v1527 = vpack.c.bf16 %v1513, %v1510
    %v1528 = vpack.c.bf16 %v1519, %v1516
    %v1533 = vunpack.c.l.b16 %v1034
    %v1534 = vunpack.c.l.b16 %v1035
    %v1535 = vunpack.c.l.b16 %v1036
    %v1536 = vunpack.c.l.b16 %v1037
    %v1537 = vpack.c.b16 %v1534, %v1533
    %v1538 = vpack.c.b16 %v1536, %v1535
    %v1542 = vsel %vm616, %v1521, 0
    %v1545 = vsel %vm616, %v1522, 0
    %v1548 = vsel %vm616, %v1523, 0
    %v1551 = vsel %vm616, %v1524, 0
    %v1554 = vsel %vm616, %v1525, 0
    %v1557 = vsel %vm616, %v1526, 0
    %v1560 = vsel %vm616, %v1527, 0
    %v1563 = vsel %vm616, %v1528, 0
    %1565 = vmatpush.bf16.msra.mxu0 0
    %1566 = vmatpush.bf16.msra.mxu0 0
    %1567 = vmatpush.bf16.msra.mxu0 0
    %1568 = vmatpush.bf16.msra.mxu0 0
    %1569 = vmatpush.bf16.msra.mxu0 0
    %1570 = vmatpush.bf16.msra.mxu0 0
    %1571 = vmatpush.bf16.msra.mxu0 %v1538
    %1572 = vmatpush.bf16.msra.mxu0 %v1537
    %1573 = vmatmul.bf16.gmra.mxu0 %v1542
    %v1574 = vpop.f32.mrf.mxu0
    %v1575 = vadd.f32 0.0, %v1574
    %v1576 = vpop.f32.mrf.mxu0
    %v1577 = vadd.f32 0.0, %v1576
    %1578 = vmatmul.bf16.gmra.mxu0 %v1545
    %v1579 = vpop.f32.mrf.mxu0
    %v1580 = vadd.f32 0.0, %v1579
    %v1581 = vpop.f32.mrf.mxu0
    %v1582 = vadd.f32 0.0, %v1581
    %1583 = vmatmul.bf16.gmra.mxu0 %v1548
    %v1584 = vpop.f32.mrf.mxu0
    %v1585 = vadd.f32 0.0, %v1584
    %v1586 = vpop.f32.mrf.mxu0
    %v1587 = vadd.f32 0.0, %v1586
    %1588 = vmatmul.bf16.gmra.mxu0 %v1551
    %v1589 = vpop.f32.mrf.mxu0
    %v1590 = vadd.f32 0.0, %v1589
    %v1591 = vpop.f32.mrf.mxu0
    %v1592 = vadd.f32 0.0, %v1591
    %1593 = vmatmul.bf16.gmra.mxu0 %v1554
    %v1594 = vpop.f32.mrf.mxu0
    %v1595 = vadd.f32 0.0, %v1594
    %v1596 = vpop.f32.mrf.mxu0
    %v1597 = vadd.f32 0.0, %v1596
    %1598 = vmatmul.bf16.gmra.mxu0 %v1557
    %v1599 = vpop.f32.mrf.mxu0
    %v1600 = vadd.f32 0.0, %v1599
    %v1601 = vpop.f32.mrf.mxu0
    %v1602 = vadd.f32 0.0, %v1601
    %1603 = vmatmul.bf16.gmra.mxu0 %v1560
    %v1604 = vpop.f32.mrf.mxu0
    %v1605 = vadd.f32 0.0, %v1604
    %v1606 = vpop.f32.mrf.mxu0
    %v1607 = vadd.f32 0.0, %v1606
    %1608 = vmatmul.bf16.gmra.mxu0 %v1563
    %v1609 = vpop.f32.mrf.mxu0
    %v1610 = vadd.f32 0.0, %v1609
    %v1611 = vpop.f32.mrf.mxu0
    %v1612 = vadd.f32 0.0, %v1611
    %1613 = vdwg.mxu0
    %v1614 = vmul.f32 %v1575, %v1575
    %v1615 = vmul.f32 %v1577, %v1577
    %v1616 = vmul.f32 %v1580, %v1580
    %v1617 = vmul.f32 %v1582, %v1582
    %v1618 = vmul.f32 %v1585, %v1585
    %v1619 = vmul.f32 %v1587, %v1587
    %v1620 = vmul.f32 %v1590, %v1590
    %v1621 = vmul.f32 %v1592, %v1592
    %v1622 = vmul.f32 %v1595, %v1595
    %v1623 = vmul.f32 %v1597, %v1597
    %v1624 = vmul.f32 %v1600, %v1600
    %v1625 = vmul.f32 %v1602, %v1602
    %v1626 = vmul.f32 %v1605, %v1605
    %v1627 = vmul.f32 %v1607, %v1607
    %v1628 = vmul.f32 %v1610, %v1610
    %v1629 = vmul.f32 %v1612, %v1612
    %v1630 = vsel %vm1407, %v1614, 0.0
    %1631 = vadd.xlane.f32.xlu0 %v1630
    %v1632 = vpop.xlane.xlu0 %1631
    %v1633 = vsel %vm1407, %v1615, 0.0
    %1634 = vadd.xlane.f32.xlu0 %v1633
    %v1635 = vpop.xlane.xlu0 %1634
    %v1636 = vsel %vm1407, %v1616, 0.0
    %1637 = vadd.xlane.f32.xlu0 %v1636
    %v1638 = vpop.xlane.xlu0 %1637
    %v1639 = vsel %vm1407, %v1617, 0.0
    %1640 = vadd.xlane.f32.xlu0 %v1639
    %v1641 = vpop.xlane.xlu0 %1640
    %v1642 = vsel %vm1407, %v1618, 0.0
    %1643 = vadd.xlane.f32.xlu0 %v1642
    %v1644 = vpop.xlane.xlu0 %1643
    %v1645 = vsel %vm1407, %v1619, 0.0
    %1646 = vadd.xlane.f32.xlu0 %v1645
    %v1647 = vpop.xlane.xlu0 %1646
    %v1648 = vsel %vm1407, %v1620, 0.0
    %1649 = vadd.xlane.f32.xlu0 %v1648
    %v1650 = vpop.xlane.xlu0 %1649
    %v1651 = vsel %vm1407, %v1621, 0.0
    %1652 = vadd.xlane.f32.xlu0 %v1651
    %v1653 = vpop.xlane.xlu0 %1652
    %v1654 = vsel %vm1407, %v1622, 0.0
    %1655 = vadd.xlane.f32.xlu0 %v1654
    %v1656 = vpop.xlane.xlu0 %1655
    %v1657 = vsel %vm1407, %v1623, 0.0
    %1658 = vadd.xlane.f32.xlu0 %v1657
    %v1659 = vpop.xlane.xlu0 %1658
    %v1660 = vsel %vm1407, %v1624, 0.0
    %1661 = vadd.xlane.f32.xlu0 %v1660
    %v1662 = vpop.xlane.xlu0 %1661
    %v1663 = vsel %vm1407, %v1625, 0.0
    %1664 = vadd.xlane.f32.xlu0 %v1663
    %v1665 = vpop.xlane.xlu0 %1664
    %v1666 = vsel %vm1407, %v1626, 0.0
    %1667 = vadd.xlane.f32.xlu0 %v1666
    %v1668 = vpop.xlane.xlu0 %1667
    %v1669 = vsel %vm1407, %v1627, 0.0
    %1670 = vadd.xlane.f32.xlu0 %v1669
    %v1671 = vpop.xlane.xlu0 %1670
    %v1672 = vsel %vm1407, %v1628, 0.0
    %1673 = vadd.xlane.f32.xlu0 %v1672
    %v1674 = vpop.xlane.xlu0 %1673
    %v1675 = vsel %vm1407, %v1629, 0.0
    %1676 = vadd.xlane.f32.xlu0 %v1675
    %v1677 = vpop.xlane.xlu0 %1676
    %v1678 = vadd.f32 %v1632, 1e-12
    %v1679 = vadd.f32 %v1635, 1e-12
    %v1680 = vadd.f32 %v1638, 1e-12
    %v1681 = vadd.f32 %v1641, 1e-12
    %v1682 = vadd.f32 %v1644, 1e-12
    %v1683 = vadd.f32 %v1647, 1e-12
    %v1684 = vadd.f32 %v1650, 1e-12
    %v1685 = vadd.f32 %v1653, 1e-12
    %v1686 = vadd.f32 %v1656, 1e-12
    %v1687 = vadd.f32 %v1659, 1e-12
    %v1688 = vadd.f32 %v1662, 1e-12
    %v1689 = vadd.f32 %v1665, 1e-12
    %v1690 = vadd.f32 %v1668, 1e-12
    %v1691 = vadd.f32 %v1671, 1e-12
    %v1692 = vadd.f32 %v1674, 1e-12
    %v1693 = vadd.f32 %v1677, 1e-12
    %v1694 = vrsqrt.pop %v1678
    %v1695 = vmul.f32 %v1694, %v1678
    %v1696 = vmul.f32 %v1695, %v1694
    %v1697 = vmul.f32 0.5, %v1696
    %v1698 = vsub.f32 1.5, %v1697
    %v1699 = vmul.f32 %v1694, %v1698
    %vm1700 = vweird.f32 %v1678
    %vm1701 = vweird.f32 %v1694
    %vm1702 = vmor %vm1700, %vm1701
    %v1703 = vsel %vm1702, %v1694, %v1699
    %v1704 = vrsqrt.pop %v1679
    %v1705 = vmul.f32 %v1704, %v1679
    %v1706 = vmul.f32 %v1705, %v1704
    %v1707 = vmul.f32 0.5, %v1706
    %v1708 = vsub.f32 1.5, %v1707
    %v1709 = vmul.f32 %v1704, %v1708
    %vm1710 = vweird.f32 %v1679
    %vm1711 = vweird.f32 %v1704
    %vm1712 = vmor %vm1710, %vm1711
    %v1713 = vsel %vm1712, %v1704, %v1709
    %v1714 = vrsqrt.pop %v1680
    %v1715 = vmul.f32 %v1714, %v1680
    %v1716 = vmul.f32 %v1715, %v1714
    %v1717 = vmul.f32 0.5, %v1716
    %v1718 = vsub.f32 1.5, %v1717
    %v1719 = vmul.f32 %v1714, %v1718
    %vm1720 = vweird.f32 %v1680
    %vm1721 = vweird.f32 %v1714
    %vm1722 = vmor %vm1720, %vm1721
    %v1723 = vsel %vm1722, %v1714, %v1719
    %v1724 = vrsqrt.pop %v1681
    %v1725 = vmul.f32 %v1724, %v1681
    %v1726 = vmul.f32 %v1725, %v1724
    %v1727 = vmul.f32 0.5, %v1726
    %v1728 = vsub.f32 1.5, %v1727
    %v1729 = vmul.f32 %v1724, %v1728
    %vm1730 = vweird.f32 %v1681
    %vm1731 = vweird.f32 %v1724
    %vm1732 = vmor %vm1730, %vm1731
    %v1733 = vsel %vm1732, %v1724, %v1729
    %v1734 = vrsqrt.pop %v1682
    %v1735 = vmul.f32 %v1734, %v1682
    %v1736 = vmul.f32 %v1735, %v1734
    %v1737 = vmul.f32 0.5, %v1736
    %v1738 = vsub.f32 1.5, %v1737
    %v1739 = vmul.f32 %v1734, %v1738
    %vm1740 = vweird.f32 %v1682
    %vm1741 = vweird.f32 %v1734
    %vm1742 = vmor %vm1740, %vm1741
    %v1743 = vsel %vm1742, %v1734, %v1739
    %v1744 = vrsqrt.pop %v1683
    %v1745 = vmul.f32 %v1744, %v1683
    %v1746 = vmul.f32 %v1745, %v1744
    %v1747 = vmul.f32 0.5, %v1746
    %v1748 = vsub.f32 1.5, %v1747
    %v1749 = vmul.f32 %v1744, %v1748
    %vm1750 = vweird.f32 %v1683
    %vm1751 = vweird.f32 %v1744
    %vm1752 = vmor %vm1750, %vm1751
    %v1753 = vsel %vm1752, %v1744, %v1749
    %v1754 = vrsqrt.pop %v1684
    %v1755 = vmul.f32 %v1754, %v1684
    %v1756 = vmul.f32 %v1755, %v1754
    %v1757 = vmul.f32 0.5, %v1756
    %v1758 = vsub.f32 1.5, %v1757
    %v1759 = vmul.f32 %v1754, %v1758
    %vm1760 = vweird.f32 %v1684
    %vm1761 = vweird.f32 %v1754
    %vm1762 = vmor %vm1760, %vm1761
    %v1763 = vsel %vm1762, %v1754, %v1759
    %v1764 = vrsqrt.pop %v1685
    %v1765 = vmul.f32 %v1764, %v1685
    %v1766 = vmul.f32 %v1765, %v1764
    %v1767 = vmul.f32 0.5, %v1766
    %v1768 = vsub.f32 1.5, %v1767
    %v1769 = vmul.f32 %v1764, %v1768
    %vm1770 = vweird.f32 %v1685
    %vm1771 = vweird.f32 %v1764
    %vm1772 = vmor %vm1770, %vm1771
    %v1773 = vsel %vm1772, %v1764, %v1769
    %v1774 = vrsqrt.pop %v1686
    %v1775 = vmul.f32 %v1774, %v1686
    %v1776 = vmul.f32 %v1775, %v1774
    %v1777 = vmul.f32 0.5, %v1776
    %v1778 = vsub.f32 1.5, %v1777
    %v1779 = vmul.f32 %v1774, %v1778
    %vm1780 = vweird.f32 %v1686
    %vm1781 = vweird.f32 %v1774
    %vm1782 = vmor %vm1780, %vm1781
    %v1783 = vsel %vm1782, %v1774, %v1779
    %v1784 = vrsqrt.pop %v1687
    %v1785 = vmul.f32 %v1784, %v1687
    %v1786 = vmul.f32 %v1785, %v1784
    %v1787 = vmul.f32 0.5, %v1786
    %v1788 = vsub.f32 1.5, %v1787
    %v1789 = vmul.f32 %v1784, %v1788
    %vm1790 = vweird.f32 %v1687
    %vm1791 = vweird.f32 %v1784
    %vm1792 = vmor %vm1790, %vm1791
    %v1793 = vsel %vm1792, %v1784, %v1789
    %v1794 = vrsqrt.pop %v1688
    %v1795 = vmul.f32 %v1794, %v1688
    %v1796 = vmul.f32 %v1795, %v1794
    %v1797 = vmul.f32 0.5, %v1796
    %v1798 = vsub.f32 1.5, %v1797
    %v1799 = vmul.f32 %v1794, %v1798
    %vm1800 = vweird.f32 %v1688
    %vm1801 = vweird.f32 %v1794
    %vm1802 = vmor %vm1800, %vm1801
    %v1803 = vsel %vm1802, %v1794, %v1799
    %v1804 = vrsqrt.pop %v1689
    %v1805 = vmul.f32 %v1804, %v1689
    %v1806 = vmul.f32 %v1805, %v1804
    %v1807 = vmul.f32 0.5, %v1806
    %v1808 = vsub.f32 1.5, %v1807
    %v1809 = vmul.f32 %v1804, %v1808
    %vm1810 = vweird.f32 %v1689
    %vm1811 = vweird.f32 %v1804
    %vm1812 = vmor %vm1810, %vm1811
    %v1813 = vsel %vm1812, %v1804, %v1809
    %v1814 = vrsqrt.pop %v1690
    %v1815 = vmul.f32 %v1814, %v1690
    %v1816 = vmul.f32 %v1815, %v1814
    %v1817 = vmul.f32 0.5, %v1816
    %v1818 = vsub.f32 1.5, %v1817
    %v1819 = vmul.f32 %v1814, %v1818
    %vm1820 = vweird.f32 %v1690
    %vm1821 = vweird.f32 %v1814
    %vm1822 = vmor %vm1820, %vm1821
    %v1823 = vsel %vm1822, %v1814, %v1819
    %v1824 = vrsqrt.pop %v1691
    %v1825 = vmul.f32 %v1824, %v1691
    %v1826 = vmul.f32 %v1825, %v1824
    %v1827 = vmul.f32 0.5, %v1826
    %v1828 = vsub.f32 1.5, %v1827
    %v1829 = vmul.f32 %v1824, %v1828
    %vm1830 = vweird.f32 %v1691
    %vm1831 = vweird.f32 %v1824
    %vm1832 = vmor %vm1830, %vm1831
    %v1833 = vsel %vm1832, %v1824, %v1829
    %v1834 = vrsqrt.pop %v1692
    %v1835 = vmul.f32 %v1834, %v1692
    %v1836 = vmul.f32 %v1835, %v1834
    %v1837 = vmul.f32 0.5, %v1836
    %v1838 = vsub.f32 1.5, %v1837
    %v1839 = vmul.f32 %v1834, %v1838
    %vm1840 = vweird.f32 %v1692
    %vm1841 = vweird.f32 %v1834
    %vm1842 = vmor %vm1840, %vm1841
    %v1843 = vsel %vm1842, %v1834, %v1839
    %v1844 = vrsqrt.pop %v1693
    %v1845 = vmul.f32 %v1844, %v1693
    %v1846 = vmul.f32 %v1845, %v1844
    %v1847 = vmul.f32 0.5, %v1846
    %v1848 = vsub.f32 1.5, %v1847
    %v1849 = vmul.f32 %v1844, %v1848
    %vm1850 = vweird.f32 %v1693
    %vm1851 = vweird.f32 %v1844
    %vm1852 = vmor %vm1850, %vm1851
    %v1853 = vsel %vm1852, %v1844, %v1849
    %v1854 = vmul.f32 %v1575, %v1703
    %v1855 = vmul.f32 %v1577, %v1713
    %v1856 = vmul.f32 %v1580, %v1723
    %v1857 = vmul.f32 %v1582, %v1733
    %v1858 = vmul.f32 %v1585, %v1743
    %v1859 = vmul.f32 %v1587, %v1753
    %v1860 = vmul.f32 %v1590, %v1763
    %v1861 = vmul.f32 %v1592, %v1773
    %v1862 = vmul.f32 %v1595, %v1783
    %v1863 = vmul.f32 %v1597, %v1793
    %v1864 = vmul.f32 %v1600, %v1803
    %v1865 = vmul.f32 %v1602, %v1813
    %v1866 = vmul.f32 %v1605, %v1823
    %v1867 = vmul.f32 %v1607, %v1833
    %v1868 = vmul.f32 %v1610, %v1843
    %v1869 = vmul.f32 %v1612, %v1853
    %v1870 = vadd.f32 %v1854, 0.0
    %v1871 = vadd.f32 %v1855, 0.0
    %v1872 = vadd.f32 %v1856, 0.0
    %v1873 = vadd.f32 %v1857, 0.0
    %v1874 = vadd.f32 %v1858, 0.0
    %v1875 = vadd.f32 %v1859, 0.0
    %v1876 = vadd.f32 %v1860, 0.0
    %v1877 = vadd.f32 %v1861, 0.0
    %v1878 = vadd.f32 %v1862, 0.0
    %v1879 = vadd.f32 %v1863, 0.0
    %v1880 = vadd.f32 %v1864, 0.0
    %v1881 = vadd.f32 %v1865, 0.0
    %v1882 = vadd.f32 %v1866, 0.0
    %v1883 = vadd.f32 %v1867, 0.0
    %v1884 = vadd.f32 %v1868, 0.0
    %v1885 = vadd.f32 %v1869, 0.0
    %v1886 = vmul.f32 %v980, %v796
    %v1887 = vmul.f32 %v983, %v798
    %v1888 = vmul.f32 %v986, %v800
    %v1889 = vmul.f32 %v989, %v802
    %v1890 = vmul.f32 %v992, %v804
    %v1891 = vmul.f32 %v995, %v806
    %v1892 = vmul.f32 %v998, %v808
    %v1893 = vmul.f32 %v1001, %v810
    %v1894 = vadd.f32 %v1046, %v1886
    %v1895 = vadd.f32 %v1047, %v1887
    %v1896 = vadd.f32 %v1048, %v1888
    %v1897 = vadd.f32 %v1049, %v1889
    %v1898 = vadd.f32 %v1050, %v1890
    %v1899 = vadd.f32 %v1051, %v1891
    %v1900 = vadd.f32 %v1052, %v1892
    %v1901 = vadd.f32 %v1053, %v1893
    %v1902 = vadd.f32 %v1003, %v1894
    %v1903 = vadd.f32 %v1004, %v1895
    %v1904 = vadd.f32 %v1005, %v1896
    %v1905 = vadd.f32 %v1006, %v1897
    %v1906 = vadd.f32 %v1007, %v1898
    %v1907 = vadd.f32 %v1008, %v1899
    %v1908 = vadd.f32 %v1009, %v1900
    %v1909 = vadd.f32 %v1010, %v1901
    %v1910 = vpack.c.bf16 %v1903, %v1902
    %v1911 = vpack.c.bf16 %v1905, %v1904
    %v1912 = vpack.c.bf16 %v1907, %v1906
    %v1913 = vpack.c.bf16 %v1909, %v1908
    %v1915 = vsel %vm616, %v1910, 0
    %v1918 = vsel %vm616, %v1911, 0
    %v1921 = vsel %vm616, %v1912, 0
    %v1924 = vsel %vm616, %v1913, 0
    %1926 = vmatpush.bf16.msra.mxu0 0
    %1927 = vmatpush.bf16.msra.mxu0 0
    %1928 = vmatpush.bf16.msra.mxu0 0
    %1929 = vmatpush.bf16.msra.mxu0 0
    %1930 = vmatpush.bf16.msra.mxu0 0
    %1931 = vmatpush.bf16.msra.mxu0 0
    %1932 = vmatpush.bf16.msra.mxu0 %v1078
    %1933 = vmatpush.bf16.msra.mxu0 %v1077
    %1934 = vmatmul.bf16.gmra.mxu0 %v1915
    %v1935 = vpop.f32.mrf.mxu0
    %v1936 = vadd.f32 %v1067, %v1935
    %v1937 = vpop.f32.mrf.mxu0
    %v1938 = vadd.f32 %v1067, %v1937
    %1939 = vmatmul.bf16.gmra.mxu0 %v1918
    %v1940 = vpop.f32.mrf.mxu0
    %v1941 = vadd.f32 %v1067, %v1940
    %v1942 = vpop.f32.mrf.mxu0
    %v1943 = vadd.f32 %v1067, %v1942
    %1944 = vmatmul.bf16.gmra.mxu0 %v1921
    %v1945 = vpop.f32.mrf.mxu0
    %v1946 = vadd.f32 %v1067, %v1945
    %v1947 = vpop.f32.mrf.mxu0
    %v1948 = vadd.f32 %v1067, %v1947
    %1949 = vmatmul.bf16.gmra.mxu0 %v1924
    %v1950 = vpop.f32.mrf.mxu0
    %v1951 = vadd.f32 %v1067, %v1950
    %v1952 = vpop.f32.mrf.mxu0
    %v1953 = vadd.f32 %v1067, %v1952
    %1954 = vdwg.mxu0
    %v1955 = vmul.f32 %v1936, %v1936
    %v1956 = vmul.f32 %v1938, %v1938
    %v1957 = vmul.f32 %v1941, %v1941
    %v1958 = vmul.f32 %v1943, %v1943
    %v1959 = vmul.f32 %v1946, %v1946
    %v1960 = vmul.f32 %v1948, %v1948
    %v1961 = vmul.f32 %v1951, %v1951
    %v1962 = vmul.f32 %v1953, %v1953
    %v1963 = vmul.f32 %v1936, %v1955
    %v1964 = vmul.f32 %v1938, %v1956
    %v1965 = vmul.f32 %v1941, %v1957
    %v1966 = vmul.f32 %v1943, %v1958
    %v1967 = vmul.f32 %v1946, %v1959
    %v1968 = vmul.f32 %v1948, %v1960
    %v1969 = vmul.f32 %v1951, %v1961
    %v1970 = vmul.f32 %v1953, %v1962
    %v1971 = vmul.f32 %v1963, 0.044715
    %v1972 = vmul.f32 %v1964, 0.044715
    %v1973 = vmul.f32 %v1965, 0.044715
    %v1974 = vmul.f32 %v1966, 0.044715
    %v1975 = vmul.f32 %v1967, 0.044715
    %v1976 = vmul.f32 %v1968, 0.044715
    %v1977 = vmul.f32 %v1969, 0.044715
    %v1978 = vmul.f32 %v1970, 0.044715
    %v1979 = vadd.f32 %v1936, %v1971
    %v1980 = vadd.f32 %v1938, %v1972
    %v1981 = vadd.f32 %v1941, %v1973
    %v1982 = vadd.f32 %v1943, %v1974
    %v1983 = vadd.f32 %v1946, %v1975
    %v1984 = vadd.f32 %v1948, %v1976
    %v1985 = vadd.f32 %v1951, %v1977
    %v1986 = vadd.f32 %v1953, %v1978
    %v1987 = vmul.f32 %v1979, 0.7978846
    %v1988 = vmul.f32 %v1980, 0.7978846
    %v1989 = vmul.f32 %v1981, 0.7978846
    %v1990 = vmul.f32 %v1982, 0.7978846
    %v1991 = vmul.f32 %v1983, 0.7978846
    %v1992 = vmul.f32 %v1984, 0.7978846
    %v1993 = vmul.f32 %v1985, 0.7978846
    %v1994 = vmul.f32 %v1986, 0.7978846
    %v1995 = vtanh.pop %v1987
    %v1996 = vtanh.pop %v1988
    %v1997 = vtanh.pop %v1989
    %v1998 = vtanh.pop %v1990
    %v1999 = vtanh.pop %v1991
    %v2000 = vtanh.pop %v1992
    %v2001 = vtanh.pop %v1993
    %v2002 = vtanh.pop %v1994
    %v2003 = vadd.f32 %v1995, 1.0
    %v2004 = vadd.f32 %v1996, 1.0
    %v2005 = vadd.f32 %v1997, 1.0
    %v2006 = vadd.f32 %v1998, 1.0
    %v2007 = vadd.f32 %v1999, 1.0
    %v2008 = vadd.f32 %v2000, 1.0
    %v2009 = vadd.f32 %v2001, 1.0
    %v2010 = vadd.f32 %v2002, 1.0
    %v2011 = vmul.f32 %v2003, 0.5
    %v2012 = vmul.f32 %v2004, 0.5
    %v2013 = vmul.f32 %v2005, 0.5
    %v2014 = vmul.f32 %v2006, 0.5
    %v2015 = vmul.f32 %v2007, 0.5
    %v2016 = vmul.f32 %v2008, 0.5
    %v2017 = vmul.f32 %v2009, 0.5
    %v2018 = vmul.f32 %v2010, 0.5
    %v2019 = vmul.f32 %v1936, %v2011
    %v2020 = vmul.f32 %v1938, %v2012
    %v2021 = vmul.f32 %v1941, %v2013
    %v2022 = vmul.f32 %v1943, %v2014
    %v2023 = vmul.f32 %v1946, %v2015
    %v2024 = vmul.f32 %v1948, %v2016
    %v2025 = vmul.f32 %v1951, %v2017
    %v2026 = vmul.f32 %v1953, %v2018
    %v2027 = vadd.f32 %v1902, %v2019
    %v2028 = vadd.f32 %v1903, %v2020
    %v2029 = vadd.f32 %v1904, %v2021
    %v2030 = vadd.f32 %v1905, %v2022
    %v2031 = vadd.f32 %v1906, %v2023
    %v2032 = vadd.f32 %v1907, %v2024
    %v2033 = vadd.f32 %v1908, %v2025
    %v2034 = vadd.f32 %v1909, %v2026
    %v2035 = vsel %vm616, %v2027, 0.0
    %2036 = vadd.xlane.f32.xlu0 %v2035
    %v2037 = vpop.xlane.xlu0 %2036
    %v2038 = vsel %vm616, %v2028, 0.0
    %2039 = vadd.xlane.f32.xlu0 %v2038
    %v2040 = vpop.xlane.xlu0 %2039
    %v2041 = vsel %vm616, %v2029, 0.0
    %2042 = vadd.xlane.f32.xlu0 %v2041
    %v2043 = vpop.xlane.xlu0 %2042
    %v2044 = vsel %vm616, %v2030, 0.0
    %2045 = vadd.xlane.f32.xlu0 %v2044
    %v2046 = vpop.xlane.xlu0 %2045
    %v2047 = vsel %vm616, %v2031, 0.0
    %2048 = vadd.xlane.f32.xlu0 %v2047
    %v2049 = vpop.xlane.xlu0 %2048
    %v2050 = vsel %vm616, %v2032, 0.0
    %2051 = vadd.xlane.f32.xlu0 %v2050
    %v2052 = vpop.xlane.xlu0 %2051
    %v2053 = vsel %vm616, %v2033, 0.0
    %2054 = vadd.xlane.f32.xlu0 %v2053
    %v2055 = vpop.xlane.xlu0 %2054
    %v2056 = vsel %vm616, %v2034, 0.0
    %2057 = vadd.xlane.f32.xlu0 %v2056
    %v2058 = vpop.xlane.xlu0 %2057
    %v2059 = vmul.f32 %v2037, %v1232
    %v2060 = vmul.f32 %v2040, %v1232
    %v2061 = vmul.f32 %v2043, %v1232
    %v2062 = vmul.f32 %v2046, %v1232
    %v2063 = vmul.f32 %v2049, %v1232
    %v2064 = vmul.f32 %v2052, %v1232
    %v2065 = vmul.f32 %v2055, %v1232
    %v2066 = vmul.f32 %v2058, %v1232
    %v2067 = vsub.f32 %v2027, %v2059
    %v2068 = vsub.f32 %v2028, %v2060
    %v2069 = vsub.f32 %v2029, %v2061
    %v2070 = vsub.f32 %v2030, %v2062
    %v2071 = vsub.f32 %v2031, %v2063
    %v2072 = vsub.f32 %v2032, %v2064
    %v2073 = vsub.f32 %v2033, %v2065
    %v2074 = vsub.f32 %v2034, %v2066
    %v2075 = vmul.f32 %v2067, %v2067
    %v2076 = vmul.f32 %v2068, %v2068
    %v2077 = vmul.f32 %v2069, %v2069
    %v2078 = vmul.f32 %v2070, %v2070
    %v2079 = vmul.f32 %v2071, %v2071
    %v2080 = vmul.f32 %v2072, %v2072
    %v2081 = vmul.f32 %v2073, %v2073
    %v2082 = vmul.f32 %v2074, %v2074
    %v2083 = vsel %vm616, %v2075, 0.0
    %2084 = vadd.xlane.f32.xlu0 %v2083
    %v2085 = vpop.xlane.xlu0 %2084
    %v2086 = vsel %vm616, %v2076, 0.0
    %2087 = vadd.xlane.f32.xlu0 %v2086
    %v2088 = vpop.xlane.xlu0 %2087
    %v2089 = vsel %vm616, %v2077, 0.0
    %2090 = vadd.xlane.f32.xlu0 %v2089
    %v2091 = vpop.xlane.xlu0 %2090
    %v2092 = vsel %vm616, %v2078, 0.0
    %2093 = vadd.xlane.f32.xlu0 %v2092
    %v2094 = vpop.xlane.xlu0 %2093
    %v2095 = vsel %vm616, %v2079, 0.0
    %2096 = vadd.xlane.f32.xlu0 %v2095
    %v2097 = vpop.xlane.xlu0 %2096
    %v2098 = vsel %vm616, %v2080, 0.0
    %2099 = vadd.xlane.f32.xlu0 %v2098
    %v2100 = vpop.xlane.xlu0 %2099
    %v2101 = vsel %vm616, %v2081, 0.0
    %2102 = vadd.xlane.f32.xlu0 %v2101
    %v2103 = vpop.xlane.xlu0 %2102
    %v2104 = vsel %vm616, %v2082, 0.0
    %2105 = vadd.xlane.f32.xlu0 %v2104
    %v2106 = vpop.xlane.xlu0 %2105
    %v2107 = vmul.f32 %v2085, %v1232
    %v2108 = vmul.f32 %v2088, %v1232
    %v2109 = vmul.f32 %v2091, %v1232
    %v2110 = vmul.f32 %v2094, %v1232
    %v2111 = vmul.f32 %v2097, %v1232
    %v2112 = vmul.f32 %v2100, %v1232
    %v2113 = vmul.f32 %v2103, %v1232
    %v2114 = vmul.f32 %v2106, %v1232
    %v2115 = vadd.f32 %v2107, 1e-05
    %v2116 = vadd.f32 %v2108, 1e-05
    %v2117 = vadd.f32 %v2109, 1e-05
    %v2118 = vadd.f32 %v2110, 1e-05
    %v2119 = vadd.f32 %v2111, 1e-05
    %v2120 = vadd.f32 %v2112, 1e-05
    %v2121 = vadd.f32 %v2113, 1e-05
    %v2122 = vadd.f32 %v2114, 1e-05
    %v2123 = vrsqrt.pop %v2115
    %v2124 = vmul.f32 %v2123, %v2115
    %v2125 = vmul.f32 %v2124, %v2123
    %v2126 = vmul.f32 0.5, %v2125
    %v2127 = vsub.f32 1.5, %v2126
    %v2128 = vmul.f32 %v2123, %v2127
    %vm2129 = vweird.f32 %v2115
    %vm2130 = vweird.f32 %v2123
    %vm2131 = vmor %vm2129, %vm2130
    %v2132 = vsel %vm2131, %v2123, %v2128
    %v2133 = vrsqrt.pop %v2116
    %v2134 = vmul.f32 %v2133, %v2116
    %v2135 = vmul.f32 %v2134, %v2133
    %v2136 = vmul.f32 0.5, %v2135
    %v2137 = vsub.f32 1.5, %v2136
    %v2138 = vmul.f32 %v2133, %v2137
    %vm2139 = vweird.f32 %v2116
    %vm2140 = vweird.f32 %v2133
    %vm2141 = vmor %vm2139, %vm2140
    %v2142 = vsel %vm2141, %v2133, %v2138
    %v2143 = vrsqrt.pop %v2117
    %v2144 = vmul.f32 %v2143, %v2117
    %v2145 = vmul.f32 %v2144, %v2143
    %v2146 = vmul.f32 0.5, %v2145
    %v2147 = vsub.f32 1.5, %v2146
    %v2148 = vmul.f32 %v2143, %v2147
    %vm2149 = vweird.f32 %v2117
    %vm2150 = vweird.f32 %v2143
    %vm2151 = vmor %vm2149, %vm2150
    %v2152 = vsel %vm2151, %v2143, %v2148
    %v2153 = vrsqrt.pop %v2118
    %v2154 = vmul.f32 %v2153, %v2118
    %v2155 = vmul.f32 %v2154, %v2153
    %v2156 = vmul.f32 0.5, %v2155
    %v2157 = vsub.f32 1.5, %v2156
    %v2158 = vmul.f32 %v2153, %v2157
    %vm2159 = vweird.f32 %v2118
    %vm2160 = vweird.f32 %v2153
    %vm2161 = vmor %vm2159, %vm2160
    %v2162 = vsel %vm2161, %v2153, %v2158
    %v2163 = vrsqrt.pop %v2119
    %v2164 = vmul.f32 %v2163, %v2119
    %v2165 = vmul.f32 %v2164, %v2163
    %v2166 = vmul.f32 0.5, %v2165
    %v2167 = vsub.f32 1.5, %v2166
    %v2168 = vmul.f32 %v2163, %v2167
    %vm2169 = vweird.f32 %v2119
    %vm2170 = vweird.f32 %v2163
    %vm2171 = vmor %vm2169, %vm2170
    %v2172 = vsel %vm2171, %v2163, %v2168
    %v2173 = vrsqrt.pop %v2120
    %v2174 = vmul.f32 %v2173, %v2120
    %v2175 = vmul.f32 %v2174, %v2173
    %v2176 = vmul.f32 0.5, %v2175
    %v2177 = vsub.f32 1.5, %v2176
    %v2178 = vmul.f32 %v2173, %v2177
    %vm2179 = vweird.f32 %v2120
    %vm2180 = vweird.f32 %v2173
    %vm2181 = vmor %vm2179, %vm2180
    %v2182 = vsel %vm2181, %v2173, %v2178
    %v2183 = vrsqrt.pop %v2121
    %v2184 = vmul.f32 %v2183, %v2121
    %v2185 = vmul.f32 %v2184, %v2183
    %v2186 = vmul.f32 0.5, %v2185
    %v2187 = vsub.f32 1.5, %v2186
    %v2188 = vmul.f32 %v2183, %v2187
    %vm2189 = vweird.f32 %v2121
    %vm2190 = vweird.f32 %v2183
    %vm2191 = vmor %vm2189, %vm2190
    %v2192 = vsel %vm2191, %v2183, %v2188
    %v2193 = vrsqrt.pop %v2122
    %v2194 = vmul.f32 %v2193, %v2122
    %v2195 = vmul.f32 %v2194, %v2193
    %v2196 = vmul.f32 0.5, %v2195
    %v2197 = vsub.f32 1.5, %v2196
    %v2198 = vmul.f32 %v2193, %v2197
    %vm2199 = vweird.f32 %v2122
    %vm2200 = vweird.f32 %v2193
    %vm2201 = vmor %vm2199, %vm2200
    %v2202 = vsel %vm2201, %v2193, %v2198
    %v2203 = vmul.f32 %v2067, %v2132
    %v2204 = vmul.f32 %v2068, %v2142
    %v2205 = vmul.f32 %v2069, %v2152
    %v2206 = vmul.f32 %v2070, %v2162
    %v2207 = vmul.f32 %v2071, %v2172
    %v2208 = vmul.f32 %v2072, %v2182
    %v2209 = vmul.f32 %v2073, %v2192
    %v2210 = vmul.f32 %v2074, %v2202
    %v2211 = vmul.f32 %v2203, %v1386
    %v2212 = vmul.f32 %v2204, %v1386
    %v2213 = vmul.f32 %v2205, %v1386
    %v2214 = vmul.f32 %v2206, %v1386
    %v2215 = vmul.f32 %v2207, %v1386
    %v2216 = vmul.f32 %v2208, %v1386
    %v2217 = vmul.f32 %v2209, %v1386
    %v2218 = vmul.f32 %v2210, %v1386
    %v2219 = vadd.f32 %v2211, %v1397
    %v2220 = vadd.f32 %v2212, %v1397
    %v2221 = vadd.f32 %v2213, %v1397
    %v2222 = vadd.f32 %v2214, %v1397
    %v2223 = vadd.f32 %v2215, %v1397
    %v2224 = vadd.f32 %v2216, %v1397
    %v2225 = vadd.f32 %v2217, %v1397
    %v2226 = vadd.f32 %v2218, %v1397
    %2227 = vmatpush.msra.mxu0 0.0
    %2228 = vmatpush.msra.mxu0 0.0
    %2229 = vmatpush.msra.mxu0 0.0
    %2230 = vmatpush.msra.mxu0 0.0
    %2231 = vmatpush.msra.mxu0 0.0
    %2232 = vmatpush.msra.mxu0 0.0
    %2233 = vmatpush.msra.mxu0 0.0
    %2234 = vmatpush.msra.mxu0 0.0
    %2235 = vmatpush.msra.mxu0 %v2226
    %2236 = vmatpush.msra.mxu0 %v2225
    %2237 = vmatpush.msra.mxu0 %v2224
    %2238 = vmatpush.msra.mxu0 %v2223
    %2239 = vmatpush.msra.mxu0 %v2222
    %2240 = vmatpush.msra.mxu0 %v2221
    %2241 = vmatpush.msra.mxu0 %v2220
    %2242 = vmatpush.msra.mxu0 %v2219
    %2243 = vmatmul.f32.gmra.mxu0 %v1409
    %v2244 = vpop.f32.mrf.mxu0
    %v2245 = vadd.f32 0.0, %v2244
    %2246 = vmatmul.f32.gmra.mxu0 %v1412
    %v2247 = vpop.f32.mrf.mxu0
    %v2248 = vadd.f32 0.0, %v2247
    %2249 = vmatmul.f32.gmra.mxu0 %v1415
    %v2250 = vpop.f32.mrf.mxu0
    %v2251 = vadd.f32 0.0, %v2250
    %2252 = vmatmul.f32.gmra.mxu0 %v1418
    %v2253 = vpop.f32.mrf.mxu0
    %v2254 = vadd.f32 0.0, %v2253
    %2255 = vmatmul.f32.gmra.mxu0 %v1421
    %v2256 = vpop.f32.mrf.mxu0
    %v2257 = vadd.f32 0.0, %v2256
    %2258 = vmatmul.f32.gmra.mxu0 %v1424
    %v2259 = vpop.f32.mrf.mxu0
    %v2260 = vadd.f32 0.0, %v2259
    %2261 = vmatmul.f32.gmra.mxu0 %v1427
    %v2262 = vpop.f32.mrf.mxu0
    %v2263 = vadd.f32 0.0, %v2262
    %2264 = vmatmul.f32.gmra.mxu0 %v1430
    %v2265 = vpop.f32.mrf.mxu0
    %v2266 = vadd.f32 0.0, %v2265
    %2267 = vmatmul.f32.gmra.mxu0 %v1433
    %v2268 = vpop.f32.mrf.mxu0
    %v2269 = vadd.f32 0.0, %v2268
    %2270 = vmatmul.f32.gmra.mxu0 %v1436
    %v2271 = vpop.f32.mrf.mxu0
    %v2272 = vadd.f32 0.0, %v2271
    %2273 = vmatmul.f32.gmra.mxu0 %v1439
    %v2274 = vpop.f32.mrf.mxu0
    %v2275 = vadd.f32 0.0, %v2274
    %2276 = vmatmul.f32.gmra.mxu0 %v1442
    %v2277 = vpop.f32.mrf.mxu0
    %v2278 = vadd.f32 0.0, %v2277
    %2279 = vmatmul.f32.gmra.mxu0 %v1445
    %v2280 = vpop.f32.mrf.mxu0
    %v2281 = vadd.f32 0.0, %v2280
    %2282 = vmatmul.f32.gmra.mxu0 %v1448
    %v2283 = vpop.f32.mrf.mxu0
    %v2284 = vadd.f32 0.0, %v2283
    %2285 = vmatmul.f32.gmra.mxu0 %v1451
    %v2286 = vpop.f32.mrf.mxu0
    %v2287 = vadd.f32 0.0, %v2286
    %2288 = vmatmul.f32.gmra.mxu0 %v1454
    %v2289 = vpop.f32.mrf.mxu0
    %v2290 = vadd.f32 0.0, %v2289
    %2291 = vdwg.mxu0
    %v2292 = vpack.c.bf16 %v2248, %v2245
    %v2293 = vpack.c.bf16 %v2254, %v2251
    %v2294 = vpack.c.bf16 %v2260, %v2257
    %v2295 = vpack.c.bf16 %v2266, %v2263
    %v2296 = vpack.c.bf16 %v2272, %v2269
    %v2297 = vpack.c.bf16 %v2278, %v2275
    %v2298 = vpack.c.bf16 %v2284, %v2281
    %v2299 = vpack.c.bf16 %v2290, %v2287
    %v2301 = vsel %vm616, %v2292, 0
    %v2304 = vsel %vm616, %v2293, 0
    %v2307 = vsel %vm616, %v2294, 0
    %v2310 = vsel %vm616, %v2295, 0
    %v2313 = vsel %vm616, %v2296, 0
    %v2316 = vsel %vm616, %v2297, 0
    %v2319 = vsel %vm616, %v2298, 0
    %v2322 = vsel %vm616, %v2299, 0
    %2324 = vmatpush.bf16.msra.mxu0 0
    %2325 = vmatpush.bf16.msra.mxu0 0
    %2326 = vmatpush.bf16.msra.mxu0 0
    %2327 = vmatpush.bf16.msra.mxu0 0
    %2328 = vmatpush.bf16.msra.mxu0 0
    %2329 = vmatpush.bf16.msra.mxu0 0
    %2330 = vmatpush.bf16.msra.mxu0 %v1538
    %2331 = vmatpush.bf16.msra.mxu0 %v1537
    %2332 = vmatmul.bf16.gmra.mxu0 %v2301
    %v2333 = vpop.f32.mrf.mxu0
    %v2334 = vadd.f32 0.0, %v2333
    %v2335 = vpop.f32.mrf.mxu0
    %v2336 = vadd.f32 0.0, %v2335
    %2337 = vmatmul.bf16.gmra.mxu0 %v2304
    %v2338 = vpop.f32.mrf.mxu0
    %v2339 = vadd.f32 0.0, %v2338
    %v2340 = vpop.f32.mrf.mxu0
    %v2341 = vadd.f32 0.0, %v2340
    %2342 = vmatmul.bf16.gmra.mxu0 %v2307
    %v2343 = vpop.f32.mrf.mxu0
    %v2344 = vadd.f32 0.0, %v2343
    %v2345 = vpop.f32.mrf.mxu0
    %v2346 = vadd.f32 0.0, %v2345
    %2347 = vmatmul.bf16.gmra.mxu0 %v2310
    %v2348 = vpop.f32.mrf.mxu0
    %v2349 = vadd.f32 0.0, %v2348
    %v2350 = vpop.f32.mrf.mxu0
    %v2351 = vadd.f32 0.0, %v2350
    %2352 = vmatmul.bf16.gmra.mxu0 %v2313
    %v2353 = vpop.f32.mrf.mxu0
    %v2354 = vadd.f32 0.0, %v2353
    %v2355 = vpop.f32.mrf.mxu0
    %v2356 = vadd.f32 0.0, %v2355
    %2357 = vmatmul.bf16.gmra.mxu0 %v2316
    %v2358 = vpop.f32.mrf.mxu0
    %v2359 = vadd.f32 0.0, %v2358
    %v2360 = vpop.f32.mrf.mxu0
    %v2361 = vadd.f32 0.0, %v2360
    %2362 = vmatmul.bf16.gmra.mxu0 %v2319
    %v2363 = vpop.f32.mrf.mxu0
    %v2364 = vadd.f32 0.0, %v2363
    %v2365 = vpop.f32.mrf.mxu0
    %v2366 = vadd.f32 0.0, %v2365
    %2367 = vmatmul.bf16.gmra.mxu0 %v2322
    %v2368 = vpop.f32.mrf.mxu0
    %v2369 = vadd.f32 0.0, %v2368
    %v2370 = vpop.f32.mrf.mxu0
    %v2371 = vadd.f32 0.0, %v2370
    %2372 = vdwg.mxu0
    %v2373 = vmul.f32 %v2334, %v2334
    %v2374 = vmul.f32 %v2336, %v2336
    %v2375 = vmul.f32 %v2339, %v2339
    %v2376 = vmul.f32 %v2341, %v2341
    %v2377 = vmul.f32 %v2344, %v2344
    %v2378 = vmul.f32 %v2346, %v2346
    %v2379 = vmul.f32 %v2349, %v2349
    %v2380 = vmul.f32 %v2351, %v2351
    %v2381 = vmul.f32 %v2354, %v2354
    %v2382 = vmul.f32 %v2356, %v2356
    %v2383 = vmul.f32 %v2359, %v2359
    %v2384 = vmul.f32 %v2361, %v2361
    %v2385 = vmul.f32 %v2364, %v2364
    %v2386 = vmul.f32 %v2366, %v2366
    %v2387 = vmul.f32 %v2369, %v2369
    %v2388 = vmul.f32 %v2371, %v2371
    %v2389 = vsel %vm1407, %v2373, 0.0
    %2390 = vadd.xlane.f32.xlu0 %v2389
    %v2391 = vpop.xlane.xlu0 %2390
    %v2392 = vsel %vm1407, %v2374, 0.0
    %2393 = vadd.xlane.f32.xlu0 %v2392
    %v2394 = vpop.xlane.xlu0 %2393
    %v2395 = vsel %vm1407, %v2375, 0.0
    %2396 = vadd.xlane.f32.xlu0 %v2395
    %v2397 = vpop.xlane.xlu0 %2396
    %v2398 = vsel %vm1407, %v2376, 0.0
    %2399 = vadd.xlane.f32.xlu0 %v2398
    %v2400 = vpop.xlane.xlu0 %2399
    %v2401 = vsel %vm1407, %v2377, 0.0
    %2402 = vadd.xlane.f32.xlu0 %v2401
    %v2403 = vpop.xlane.xlu0 %2402
    %v2404 = vsel %vm1407, %v2378, 0.0
    %2405 = vadd.xlane.f32.xlu0 %v2404
    %v2406 = vpop.xlane.xlu0 %2405
    %v2407 = vsel %vm1407, %v2379, 0.0
    %2408 = vadd.xlane.f32.xlu0 %v2407
    %v2409 = vpop.xlane.xlu0 %2408
    %v2410 = vsel %vm1407, %v2380, 0.0
    %2411 = vadd.xlane.f32.xlu0 %v2410
    %v2412 = vpop.xlane.xlu0 %2411
    %v2413 = vsel %vm1407, %v2381, 0.0
    %2414 = vadd.xlane.f32.xlu0 %v2413
    %v2415 = vpop.xlane.xlu0 %2414
    %v2416 = vsel %vm1407, %v2382, 0.0
    %2417 = vadd.xlane.f32.xlu0 %v2416
    %v2418 = vpop.xlane.xlu0 %2417
    %v2419 = vsel %vm1407, %v2383, 0.0
    %2420 = vadd.xlane.f32.xlu0 %v2419
    %v2421 = vpop.xlane.xlu0 %2420
    %v2422 = vsel %vm1407, %v2384, 0.0
    %2423 = vadd.xlane.f32.xlu0 %v2422
    %v2424 = vpop.xlane.xlu0 %2423
    %v2425 = vsel %vm1407, %v2385, 0.0
    %2426 = vadd.xlane.f32.xlu0 %v2425
    %v2427 = vpop.xlane.xlu0 %2426
    %v2428 = vsel %vm1407, %v2386, 0.0
    %2429 = vadd.xlane.f32.xlu0 %v2428
    %v2430 = vpop.xlane.xlu0 %2429
    %v2431 = vsel %vm1407, %v2387, 0.0
    %2432 = vadd.xlane.f32.xlu0 %v2431
    %v2433 = vpop.xlane.xlu0 %2432
    %v2434 = vsel %vm1407, %v2388, 0.0
    %2435 = vadd.xlane.f32.xlu0 %v2434
    %v2436 = vpop.xlane.xlu0 %2435
    %v2437 = vadd.f32 %v2391, 1e-12
    %v2438 = vadd.f32 %v2394, 1e-12
    %v2439 = vadd.f32 %v2397, 1e-12
    %v2440 = vadd.f32 %v2400, 1e-12
    %v2441 = vadd.f32 %v2403, 1e-12
    %v2442 = vadd.f32 %v2406, 1e-12
    %v2443 = vadd.f32 %v2409, 1e-12
    %v2444 = vadd.f32 %v2412, 1e-12
    %v2445 = vadd.f32 %v2415, 1e-12
    %v2446 = vadd.f32 %v2418, 1e-12
    %v2447 = vadd.f32 %v2421, 1e-12
    %v2448 = vadd.f32 %v2424, 1e-12
    %v2449 = vadd.f32 %v2427, 1e-12
    %v2450 = vadd.f32 %v2430, 1e-12
    %v2451 = vadd.f32 %v2433, 1e-12
    %v2452 = vadd.f32 %v2436, 1e-12
    %v2453 = vrsqrt.pop %v2437
    %v2454 = vmul.f32 %v2453, %v2437
    %v2455 = vmul.f32 %v2454, %v2453
    %v2456 = vmul.f32 0.5, %v2455
    %v2457 = vsub.f32 1.5, %v2456
    %v2458 = vmul.f32 %v2453, %v2457
    %vm2459 = vweird.f32 %v2437
    %vm2460 = vweird.f32 %v2453
    %vm2461 = vmor %vm2459, %vm2460
    %v2462 = vsel %vm2461, %v2453, %v2458
    %v2463 = vrsqrt.pop %v2438
    %v2464 = vmul.f32 %v2463, %v2438
    %v2465 = vmul.f32 %v2464, %v2463
    %v2466 = vmul.f32 0.5, %v2465
    %v2467 = vsub.f32 1.5, %v2466
    %v2468 = vmul.f32 %v2463, %v2467
    %vm2469 = vweird.f32 %v2438
    %vm2470 = vweird.f32 %v2463
    %vm2471 = vmor %vm2469, %vm2470
    %v2472 = vsel %vm2471, %v2463, %v2468
    %v2473 = vrsqrt.pop %v2439
    %v2474 = vmul.f32 %v2473, %v2439
    %v2475 = vmul.f32 %v2474, %v2473
    %v2476 = vmul.f32 0.5, %v2475
    %v2477 = vsub.f32 1.5, %v2476
    %v2478 = vmul.f32 %v2473, %v2477
    %vm2479 = vweird.f32 %v2439
    %vm2480 = vweird.f32 %v2473
    %vm2481 = vmor %vm2479, %vm2480
    %v2482 = vsel %vm2481, %v2473, %v2478
    %v2483 = vrsqrt.pop %v2440
    %v2484 = vmul.f32 %v2483, %v2440
    %v2485 = vmul.f32 %v2484, %v2483
    %v2486 = vmul.f32 0.5, %v2485
    %v2487 = vsub.f32 1.5, %v2486
    %v2488 = vmul.f32 %v2483, %v2487
    %vm2489 = vweird.f32 %v2440
    %vm2490 = vweird.f32 %v2483
    %vm2491 = vmor %vm2489, %vm2490
    %v2492 = vsel %vm2491, %v2483, %v2488
    %v2493 = vrsqrt.pop %v2441
    %v2494 = vmul.f32 %v2493, %v2441
    %v2495 = vmul.f32 %v2494, %v2493
    %v2496 = vmul.f32 0.5, %v2495
    %v2497 = vsub.f32 1.5, %v2496
    %v2498 = vmul.f32 %v2493, %v2497
    %vm2499 = vweird.f32 %v2441
    %vm2500 = vweird.f32 %v2493
    %vm2501 = vmor %vm2499, %vm2500
    %v2502 = vsel %vm2501, %v2493, %v2498
    %v2503 = vrsqrt.pop %v2442
    %v2504 = vmul.f32 %v2503, %v2442
    %v2505 = vmul.f32 %v2504, %v2503
    %v2506 = vmul.f32 0.5, %v2505
    %v2507 = vsub.f32 1.5, %v2506
    %v2508 = vmul.f32 %v2503, %v2507
    %vm2509 = vweird.f32 %v2442
    %vm2510 = vweird.f32 %v2503
    %vm2511 = vmor %vm2509, %vm2510
    %v2512 = vsel %vm2511, %v2503, %v2508
    %v2513 = vrsqrt.pop %v2443
    %v2514 = vmul.f32 %v2513, %v2443
    %v2515 = vmul.f32 %v2514, %v2513
    %v2516 = vmul.f32 0.5, %v2515
    %v2517 = vsub.f32 1.5, %v2516
    %v2518 = vmul.f32 %v2513, %v2517
    %vm2519 = vweird.f32 %v2443
    %vm2520 = vweird.f32 %v2513
    %vm2521 = vmor %vm2519, %vm2520
    %v2522 = vsel %vm2521, %v2513, %v2518
    %v2523 = vrsqrt.pop %v2444
    %v2524 = vmul.f32 %v2523, %v2444
    %v2525 = vmul.f32 %v2524, %v2523
    %v2526 = vmul.f32 0.5, %v2525
    %v2527 = vsub.f32 1.5, %v2526
    %v2528 = vmul.f32 %v2523, %v2527
    %vm2529 = vweird.f32 %v2444
    %vm2530 = vweird.f32 %v2523
    %vm2531 = vmor %vm2529, %vm2530
    %v2532 = vsel %vm2531, %v2523, %v2528
    %v2533 = vrsqrt.pop %v2445
    %v2534 = vmul.f32 %v2533, %v2445
    %v2535 = vmul.f32 %v2534, %v2533
    %v2536 = vmul.f32 0.5, %v2535
    %v2537 = vsub.f32 1.5, %v2536
    %v2538 = vmul.f32 %v2533, %v2537
    %vm2539 = vweird.f32 %v2445
    %vm2540 = vweird.f32 %v2533
    %vm2541 = vmor %vm2539, %vm2540
    %v2542 = vsel %vm2541, %v2533, %v2538
    %v2543 = vrsqrt.pop %v2446
    %v2544 = vmul.f32 %v2543, %v2446
    %v2545 = vmul.f32 %v2544, %v2543
    %v2546 = vmul.f32 0.5, %v2545
    %v2547 = vsub.f32 1.5, %v2546
    %v2548 = vmul.f32 %v2543, %v2547
    %vm2549 = vweird.f32 %v2446
    %vm2550 = vweird.f32 %v2543
    %vm2551 = vmor %vm2549, %vm2550
    %v2552 = vsel %vm2551, %v2543, %v2548
    %v2553 = vrsqrt.pop %v2447
    %v2554 = vmul.f32 %v2553, %v2447
    %v2555 = vmul.f32 %v2554, %v2553
    %v2556 = vmul.f32 0.5, %v2555
    %v2557 = vsub.f32 1.5, %v2556
    %v2558 = vmul.f32 %v2553, %v2557
    %vm2559 = vweird.f32 %v2447
    %vm2560 = vweird.f32 %v2553
    %vm2561 = vmor %vm2559, %vm2560
    %v2562 = vsel %vm2561, %v2553, %v2558
    %v2563 = vrsqrt.pop %v2448
    %v2564 = vmul.f32 %v2563, %v2448
    %v2565 = vmul.f32 %v2564, %v2563
    %v2566 = vmul.f32 0.5, %v2565
    %v2567 = vsub.f32 1.5, %v2566
    %v2568 = vmul.f32 %v2563, %v2567
    %vm2569 = vweird.f32 %v2448
    %vm2570 = vweird.f32 %v2563
    %vm2571 = vmor %vm2569, %vm2570
    %v2572 = vsel %vm2571, %v2563, %v2568
    %v2573 = vrsqrt.pop %v2449
    %v2574 = vmul.f32 %v2573, %v2449
    %v2575 = vmul.f32 %v2574, %v2573
    %v2576 = vmul.f32 0.5, %v2575
    %v2577 = vsub.f32 1.5, %v2576
    %v2578 = vmul.f32 %v2573, %v2577
    %vm2579 = vweird.f32 %v2449
    %vm2580 = vweird.f32 %v2573
    %vm2581 = vmor %vm2579, %vm2580
    %v2582 = vsel %vm2581, %v2573, %v2578
    %v2583 = vrsqrt.pop %v2450
    %v2584 = vmul.f32 %v2583, %v2450
    %v2585 = vmul.f32 %v2584, %v2583
    %v2586 = vmul.f32 0.5, %v2585
    %v2587 = vsub.f32 1.5, %v2586
    %v2588 = vmul.f32 %v2583, %v2587
    %vm2589 = vweird.f32 %v2450
    %vm2590 = vweird.f32 %v2583
    %vm2591 = vmor %vm2589, %vm2590
    %v2592 = vsel %vm2591, %v2583, %v2588
    %v2593 = vrsqrt.pop %v2451
    %v2594 = vmul.f32 %v2593, %v2451
    %v2595 = vmul.f32 %v2594, %v2593
    %v2596 = vmul.f32 0.5, %v2595
    %v2597 = vsub.f32 1.5, %v2596
    %v2598 = vmul.f32 %v2593, %v2597
    %vm2599 = vweird.f32 %v2451
    %vm2600 = vweird.f32 %v2593
    %vm2601 = vmor %vm2599, %vm2600
    %v2602 = vsel %vm2601, %v2593, %v2598
    %v2603 = vrsqrt.pop %v2452
    %v2604 = vmul.f32 %v2603, %v2452
    %v2605 = vmul.f32 %v2604, %v2603
    %v2606 = vmul.f32 0.5, %v2605
    %v2607 = vsub.f32 1.5, %v2606
    %v2608 = vmul.f32 %v2603, %v2607
    %vm2609 = vweird.f32 %v2452
    %vm2610 = vweird.f32 %v2603
    %vm2611 = vmor %vm2609, %vm2610
    %v2612 = vsel %vm2611, %v2603, %v2608
    %v2613 = vmul.f32 %v2334, %v2462
    %v2614 = vmul.f32 %v2336, %v2472
    %v2615 = vmul.f32 %v2339, %v2482
    %v2616 = vmul.f32 %v2341, %v2492
    %v2617 = vmul.f32 %v2344, %v2502
    %v2618 = vmul.f32 %v2346, %v2512
    %v2619 = vmul.f32 %v2349, %v2522
    %v2620 = vmul.f32 %v2351, %v2532
    %v2621 = vmul.f32 %v2354, %v2542
    %v2622 = vmul.f32 %v2356, %v2552
    %v2623 = vmul.f32 %v2359, %v2562
    %v2624 = vmul.f32 %v2361, %v2572
    %v2625 = vmul.f32 %v2364, %v2582
    %v2626 = vmul.f32 %v2366, %v2592
    %v2627 = vmul.f32 %v2369, %v2602
    %v2628 = vmul.f32 %v2371, %v2612
    %v2629 = vadd.f32 %v1870, %v2613
    %v2630 = vadd.f32 %v1871, %v2614
    %v2631 = vadd.f32 %v1872, %v2615
    %v2632 = vadd.f32 %v1873, %v2616
    %v2633 = vadd.f32 %v1874, %v2617
    %v2634 = vadd.f32 %v1875, %v2618
    %v2635 = vadd.f32 %v1876, %v2619
    %v2636 = vadd.f32 %v1877, %v2620
    %v2637 = vadd.f32 %v1878, %v2621
    %v2638 = vadd.f32 %v1879, %v2622
    %v2639 = vadd.f32 %v1880, %v2623
    %v2640 = vadd.f32 %v1881, %v2624
    %v2641 = vadd.f32 %v1882, %v2625
    %v2642 = vadd.f32 %v1883, %v2626
    %v2643 = vadd.f32 %v1884, %v2627
    %v2644 = vadd.f32 %v1885, %v2628
    %v2646 = vsel %vm1407, %v582, 0
    %v2649 = vsel %vm1407, %v2629, 0
    %v2652 = vsel %vm1407, %v2630, 0
    %v2655 = vsel %vm1407, %v2631, 0
    %v2658 = vsel %vm1407, %v2632, 0
    %v2661 = vsel %vm1407, %v2633, 0
    %v2664 = vsel %vm1407, %v2634, 0
    %v2667 = vsel %vm1407, %v2635, 0
    %v2670 = vsel %vm1407, %v2636, 0
    %v2673 = vsel %vm1407, %v2637, 0
    %v2676 = vsel %vm1407, %v2638, 0
    %v2679 = vsel %vm1407, %v2639, 0
    %v2682 = vsel %vm1407, %v2640, 0
    %v2685 = vsel %vm1407, %v2641, 0
    %v2688 = vsel %vm1407, %v2642, 0
    %v2691 = vsel %vm1407, %v2643, 0
    %v2694 = vsel %vm1407, %v2644, 0
    %2696 = vmatpush.xpose.msra.mxu0 %v2694
    %2697 = vmatpush.xpose.msra.mxu0 %v2691
    %2698 = vmatpush.xpose.msra.mxu0 %v2688
    %2699 = vmatpush.xpose.msra.mxu0 %v2685
    %2700 = vmatpush.xpose.msra.mxu0 %v2682
    %2701 = vmatpush.xpose.msra.mxu0 %v2679
    %2702 = vmatpush.xpose.msra.mxu0 %v2676
    %2703 = vmatpush.xpose.msra.mxu0 %v2673
    %2704 = vmatpush.xpose.msra.mxu0 %v2670
    %2705 = vmatpush.xpose.msra.mxu0 %v2667
    %2706 = vmatpush.xpose.msra.mxu0 %v2664
    %2707 = vmatpush.xpose.msra.mxu0 %v2661
    %2708 = vmatpush.xpose.msra.mxu0 %v2658
    %2709 = vmatpush.xpose.msra.mxu0 %v2655
    %2710 = vmatpush.xpose.msra.mxu0 %v2652
    %2711 = vmatpush.xpose.msra.mxu0 %v2649
    %2712 = vmatmul.f32.gmra.mxu0 %v2646
    %v2713 = vpop.f32.mrf.mxu0
    %v2714 = vadd.f32 0.0, %v2713
    %2715 = vdwg.mxu0
    %2716 = vst [vmem:[#allocation3] sm:$0x3] %v2714
    // Predicated region
    $region90: #{clip_lrn_promptg_forward.1} parent=1 // pred_check
      _
    $region91: #{clip_lrn_promptg_forward.1} parent=1 // pred_check_branch
      %2718 = sbr.rel (0) target = $region93
    $region92: #{clip_lrn_promptg_forward.1} parent=1 // pred_region
      %2720 = vsyncadd [#allocation4], 0
      %s2722 = sshll.u32 [#allocation3], 4
      %s2723 = int_to_ptr.vmem [resolvable:$true] %s2722
      %s2724 = sshll.u32 %s22, 4
      %s2725 = int_to_ptr.hbm [resolvable:$true] %s2724
      %2727 = dma.vmem_to_hbm [thread:$0]  %s2723, 32, %s2725, [#allocation4]
    $region93: #{clip_lrn_promptg_forward.1} parent=1 // pred_fallthru
      _
    // Predicated region
    $region94: #{clip_lrn_promptg_forward.1} parent=1 // pred_check
      _
    $region95: #{clip_lrn_promptg_forward.1} parent=1 // pred_check_branch
      %2729 = sbr.rel (0) target = $region97
    $region96: #{clip_lrn_promptg_forward.1} parent=1 // pred_region
      %2731 = vsyncadd [#allocation5], 0
      %s2733 = sshll.u32 %s23, 4
      %s2734 = int_to_ptr.hbm [resolvable:$true] %s2733
      %2736 = dma.smem_to_hbm [#allocation6], 16, %s2734, [#allocation5]
    $region97: #{clip_lrn_promptg_forward.1} parent=1 // pred_fallthru
      _
    // Predicated region
    $region98: #{clip_lrn_promptg_forward.1} parent=1 // pred_check
      _
    $region99: #{clip_lrn_promptg_forward.1} parent=1 // pred_check_branch
      %2738 = sbr.rel (0) target = $region101
    $region100: #{clip_lrn_promptg_forward.1} parent=1 // pred_region
      %2740 = dma.done [#allocation4], 32
    $region101: #{clip_lrn_promptg_forward.1} parent=1 // pred_fallthru
      _
    // Predicated region
    $region102: #{clip_lrn_promptg_forward.1} parent=1 // pred_check
      _
    $region103: #{clip_lrn_promptg_forward.1} parent=1 // pred_check_branch
      %2742 = sbr.rel (0) target = $region105
    $region104: #{clip_lrn_promptg_forward.1} parent=1 // pred_region
      %2744 = dma.done [#allocation5], 16
    $region105: #{clip_lrn_promptg_forward.1} parent=1 // pred_fallthru
      _
    %2745 = sfence
    %2746 = vsyncpa [#allocation4], 1
    %2747 = vsyncpa [#allocation5], 1

</llo_original>
